<compile_context>
chip_gen: v7x
topology: tpu7x:2x2x1
jax: 0.10.0
libtpu: 0.0.40
codegen_flags: <defaults>
</compile_context>

<pallas_src>
import numpy as np
import jax
import jax.numpy as jnp
from jax.experimental import pallas as pl
from jax.experimental.pallas import tpu as pltpu


def _pool_select(n_batch, l_cur, l_next):
    """Selection matrix for MaxPool1d(2,2) applied to the pre-maxed, batch-fused
    conv output (length n*(l_cur+4)-5), producing the next conv's zero-haloed
    padded fused layout (length n*(l_next+4))."""
    src = n_batch * (l_cur + 4) - 5
    dst = n_batch * (l_next + 4)
    se = np.zeros((dst, src), np.float32)
    for n in range(n_batch):
        for p in range(l_next):
            se[n * (l_next + 4) + 2 + p, n * (l_cur + 4) + 2 * p] = 1.0
    return jnp.asarray(se)


def _pool_select_flat(n_batch, l_cur, l_next):
    """Final maxpool selection on the pre-maxed conv3 output: produces
    position-major rows (row = p*N + n), no halos, ready for the merged fc1."""
    src = n_batch * (l_cur + 4) - 5
    se = np.zeros((l_next * n_batch, src), np.float32)
    for p in range(l_next):
        for n in range(n_batch):
            se[p * n_batch + n, n * (l_cur + 4) + 2 * p] = 1.0
    return jnp.asarray(se)


def cnn_kernel(x1_ref, w1_ref, w2_ref, w3_ref, wfc1_ref, wfc2_ref, bias_ref,
               s1_ref, s2_ref, s3_ref, out_ref):
    f32 = jnp.float32

    def pool(se_ref, r):
        # Pre-max on the VPU, then a single selection matmul (drops the
        # cross-sample garbage rows and re-inserts zero halos).
        m = jnp.maximum(r[:-1, :], r[1:, :])
        return jnp.dot(se_ref[...], m, preferred_element_type=f32)

    def im2col5(x):
        # x is (rows, 128) channel-padded -> each tap is one full lane tile,
        # so the concat is 128-aligned (pure vreg placement).
        lout = x.shape[0] - 4
        return jnp.concatenate([x[k:k + lout, :] for k in range(5)], axis=-1)

    # conv1: single im2col matmul; bias folded via the ones lane of x1.
    r1 = jnp.maximum(
        jnp.dot(x1_ref[...], w1_ref[...], preferred_element_type=f32), 0.0)
    p1 = pool(s1_ref, r1)                                   # (N*(L/2+4), 128)

    # conv2: one K=640 matmul (taps stacked along lanes, channels padded).
    b2 = bias_ref[0:1, :]
    r2 = jnp.maximum(
        jnp.dot(im2col5(p1), w2_ref[...], preferred_element_type=f32) + b2, 0.0)
    p2 = pool(s2_ref, r2)                                   # (N*(L/4+4), 128)

    # conv3: one K=640 matmul.
    b3 = bias_ref[1:2, :]
    r3 = jnp.maximum(
        jnp.dot(im2col5(p2), w3_ref[...], preferred_element_type=f32) + b3, 0.0)
    p3 = pool(s3_ref, r3)                                   # (L3*N, 128) pos-major

    # fc1: single matmul against the lane-concatenated weight + slice-adds.
    n = out_ref.shape[0]
    l3 = p3.shape[0] // n
    y = jnp.dot(p3, wfc1_ref[...], preferred_element_type=f32)   # (L3*N, L3*64)
    acc = y[0:n, 0:64]
    for p in range(1, l3):
        acc = acc + y[p * n:(p + 1) * n, p * 64:(p + 1) * 64]
    h = jnp.maximum(acc + bias_ref[2:3, 0:64], 0.0)         # (N, 64)
    # TODO(synk): nn.Dropout(0.3) is identity in eval mode; training-mode
    # stochastic mask is not implemented here.
    out_ref[...] = (jnp.dot(h, wfc2_ref[...], preferred_element_type=f32)
                    + bias_ref[3:4, :])


def cnn_forward(x, params):
    w1, b1, w2, b2, w3, b3, wfc1, bfc1, wfc2, bfc2 = params
    N, L, _ = x.shape
    NC = wfc2.shape[1]
    L3 = L // 8
    nc_pad = 128

    # --- layout plumbing (plain XLA, outside the latency-bound kernel) ---
    # conv1 im2col: batch-fused zero-padded signal, 5 shifted copies in lanes,
    # plus a ones lane that carries the conv1 bias.
    xp = jnp.pad(x, ((0, 0), (2, 2), (0, 0))).reshape(N * (L + 4))
    lout1 = N * (L + 4) - 4
    x1col = jnp.stack([xp[k:k + lout1] for k in range(5)]
                      + [jnp.ones((lout1,), jnp.float32)], axis=-1)    # (lout1, 6)
    w1f = jnp.concatenate([w1.reshape(5, 32), b1.reshape(1, 32)], axis=0)
    w1f = jnp.pad(w1f, ((0, 0), (0, 128 - 32)))                        # (6, 128)

    # conv2/conv3 im2col weights: (tap, cin) flattened with cin padded to 128
    # lanes per tap (matches the in-kernel lane-aligned concat), cout padded
    # to 128 so every activation slab is lane-dense.
    w2col = jnp.pad(w2, ((0, 0), (0, 128 - 32), (0, 128 - 64))).reshape(640, 128)
    w3col = jnp.pad(w3, ((0, 0), (0, 128 - 64), (0, 0))).reshape(640, 128)

    # fc1 weight concatenated along output lanes; fc2 lane-padded to 128.
    wfc1cat = jnp.concatenate([wfc1[p] for p in range(L3)], axis=-1)   # (128, L3*64)
    wfc2_p = jnp.pad(wfc2, ((0, 0), (0, nc_pad - NC)))                 # (64, 128)

    # All remaining biases packed into one small slab.
    bias_slab = jnp.zeros((8, 128), jnp.float32)
    bias_slab = bias_slab.at[0, :64].set(b2[0])
    bias_slab = bias_slab.at[1, :].set(b3[0])
    bias_slab = bias_slab.at[2, :64].set(bfc1[0])
    bias_slab = bias_slab.at[3, :NC].set(bfc2[0])

    # MaxPool selection matrices (numpy constants, tiny).
    s1 = _pool_select(N, L, L // 2)
    s2 = _pool_select(N, L // 2, L // 4)
    s3 = _pool_select_flat(N, L // 4, L // 8)

    inputs = (x1col, w1f, w2col, w3col, wfc1cat, wfc2_p, bias_slab, s1, s2, s3)
    out = pl.pallas_call(
        cnn_kernel,
        out_shape=jax.ShapeDtypeStruct((N, nc_pad), jnp.float32),
        in_specs=[pl.BlockSpec(memory_space=pltpu.MemorySpace.VMEM)] * len(inputs),
        out_specs=pl.BlockSpec(memory_space=pltpu.MemorySpace.VMEM),
    )(*inputs)
    return out[:, :NC]


def cnn_reference(x, params):
    """Pure-JAX reference with identical math for verification."""
    w1, b1, w2, b2, w3, b3, wfc1, bfc1, wfc2, bfc2 = params

    def conv5(xv, w, b):
        Lc = xv.shape[0]
        xp = jnp.pad(xv, ((2, 2), (0, 0)))
        acc = jnp.broadcast_to(b, (Lc, w.shape[2]))
        for k in range(5):
            acc = acc + xp[k:k + Lc, :] @ w[k]
        return jax.nn.relu(acc)

    def pool(r):
        P, C = r.shape[0] // 2, r.shape[1]
        return r.reshape(P, 2, C).max(axis=1)

    outs = []
    for n in range(x.shape[0]):
        h = pool(conv5(x[n], w1, b1))
        h = pool(conv5(h, w2, b2))
        h = pool(conv5(h, w3, b3))
        fc = bfc1 + jnp.einsum('lc,lck->k', h, wfc1)[None, :]
        fc = jax.nn.relu(fc)
        outs.append((fc @ wfc2 + bfc2)[0])
    return jnp.stack(outs)


if __name__ == "__main__":
    key = jax.random.PRNGKey(0)
    N, L, NC = 2, 16, 10                       # batch=2, input_length=16, classes=10
    keys = jax.random.split(key, 11)

    def init(k, shape, fan_in):
        return (jax.random.normal(k, shape, dtype=jnp.float32)
                / jnp.sqrt(jnp.float32(fan_in)))

    x = jax.random.normal(keys[0], (N, L, 1), dtype=jnp.float32)
    L3 = L // 8
    w1 = init(keys[1], (5, 1, 32), 5 * 1)
    b1 = init(keys[2], (1, 32), 5 * 1)
    w2 = init(keys[3], (5, 32, 64), 5 * 32)
    b2 = init(keys[4], (1, 64), 5 * 32)
    w3 = init(keys[5], (5, 64, 128), 5 * 64)
    b3 = init(keys[6], (1, 128), 5 * 64)
    wfc1 = init(keys[7], (L3, 128, 64), 128 * L3)
    bfc1 = init(keys[8], (1, 64), 128 * L3)
    wfc2 = init(keys[9], (64, NC), 64)
    bfc2 = init(keys[10], (1, NC), 64)
    params = (w1, b1, w2, b2, w3, b3, wfc1, bfc1, wfc2, bfc2)

    out = cnn_forward(x, params)
    jax.block_until_ready(out)

    ref = cnn_reference(x, params)
    assert out.shape == (N, NC)
    assert jnp.allclose(out, ref, atol=1e-4, rtol=1e-4)
    print("KERNEL_OK")
</pallas_src>

<mosaic_0001>
module attributes {stable_mosaic.version = 11 : i64} {
  func.func @cnn_kernel(%arg0: memref<36x6xf32, #tpu.memory_space<vmem>>, %arg1: memref<6x128xf32, #tpu.memory_space<vmem>>, %arg2: memref<640x128xf32, #tpu.memory_space<vmem>>, %arg3: memref<640x128xf32, #tpu.memory_space<vmem>>, %arg4: memref<128x128xf32, #tpu.memory_space<vmem>>, %arg5: memref<64x128xf32, #tpu.memory_space<vmem>>, %arg6: memref<8x128xf32, #tpu.memory_space<vmem>>, %arg7: memref<24x35xf32, #tpu.memory_space<vmem>>, %arg8: memref<16x19xf32, #tpu.memory_space<vmem>>, %arg9: memref<4x11xf32, #tpu.memory_space<vmem>>, %arg10: memref<2x128xf32, #tpu.memory_space<vmem>>) attributes {dimension_semantics = [], scalar_prefetch = 0 : i64, scratch_operands = 0 : i64, tpu.core_type = #tpu.core_type<tc>} {
    %c0 = arith.constant 0 : index
    %c0_0 = arith.constant 0 : index
    %0 = vector.load %arg0[%c0, %c0_0] : memref<36x6xf32, #tpu.memory_space<vmem>>, vector<36x6xf32>
    %c0_1 = arith.constant 0 : index
    %c0_2 = arith.constant 0 : index
    %1 = vector.load %arg1[%c0_1, %c0_2] : memref<6x128xf32, #tpu.memory_space<vmem>>, vector<6x128xf32>
    %cst = arith.constant dense<0.000000e+00> : vector<36x128xf32>
    %2 = tpu.matmul %0, %1, %cst {dimension_numbers = #tpu.dot_dimension_numbers<[1], [0], [0], [1], [0, 0, 1, 1], [], []>} : vector<36x6xf32>, vector<6x128xf32>, vector<36x128xf32> -> vector<36x128xf32>
    %cst_3 = arith.constant 0.000000e+00 : f32
    %3 = vector.broadcast %cst_3 : f32 to vector<36x128xf32>
    %4 = arith.maximumf %2, %3 : vector<36x128xf32>
    %5 = vector.extract_strided_slice %4 {offsets = [0, 0], sizes = [35, 128], strides = [1, 1]} : vector<36x128xf32> to vector<35x128xf32>
    %6 = vector.extract_strided_slice %4 {offsets = [1, 0], sizes = [35, 128], strides = [1, 1]} : vector<36x128xf32> to vector<35x128xf32>
    %7 = arith.maximumf %5, %6 : vector<35x128xf32>
    %c0_4 = arith.constant 0 : index
    %c0_5 = arith.constant 0 : index
    %8 = vector.load %arg7[%c0_4, %c0_5] : memref<24x35xf32, #tpu.memory_space<vmem>>, vector<24x35xf32>
    %cst_6 = arith.constant dense<0.000000e+00> : vector<24x128xf32>
    %9 = tpu.matmul %8, %7, %cst_6 {dimension_numbers = #tpu.dot_dimension_numbers<[1], [0], [0], [1], [0, 0, 1, 1], [], []>} : vector<24x35xf32>, vector<35x128xf32>, vector<24x128xf32> -> vector<24x128xf32>
    %c0_7 = arith.constant 0 : index
    %c0_8 = arith.constant 0 : index
    %10 = vector.load %arg6[%c0_7, %c0_8] : memref<8x128xf32, #tpu.memory_space<vmem>>, vector<1x128xf32>
    %11 = vector.extract_strided_slice %9 {offsets = [0, 0], sizes = [20, 128], strides = [1, 1]} : vector<24x128xf32> to vector<20x128xf32>
    %12 = vector.extract_strided_slice %9 {offsets = [1, 0], sizes = [20, 128], strides = [1, 1]} : vector<24x128xf32> to vector<20x128xf32>
    %13 = vector.extract_strided_slice %9 {offsets = [2, 0], sizes = [20, 128], strides = [1, 1]} : vector<24x128xf32> to vector<20x128xf32>
    %14 = vector.extract_strided_slice %9 {offsets = [3, 0], sizes = [20, 128], strides = [1, 1]} : vector<24x128xf32> to vector<20x128xf32>
    %15 = vector.extract_strided_slice %9 {offsets = [4, 0], sizes = [20, 128], strides = [1, 1]} : vector<24x128xf32> to vector<20x128xf32>
    %16 = tpu.concatenate %11, %12, %13, %14, %15 in 1 : vector<20x128xf32>, vector<20x128xf32>, vector<20x128xf32>, vector<20x128xf32>, vector<20x128xf32> -> vector<20x640xf32>
    %c0_9 = arith.constant 0 : index
    %c0_10 = arith.constant 0 : index
    %17 = vector.load %arg2[%c0_9, %c0_10] : memref<640x128xf32, #tpu.memory_space<vmem>>, vector<640x128xf32>
    %cst_11 = arith.constant dense<0.000000e+00> : vector<20x128xf32>
    %18 = tpu.matmul %16, %17, %cst_11 {dimension_numbers = #tpu.dot_dimension_numbers<[1], [0], [0], [1], [0, 0, 1, 1], [], []>} : vector<20x640xf32>, vector<640x128xf32>, vector<20x128xf32> -> vector<20x128xf32>
    %19 = vector.broadcast %10 : vector<1x128xf32> to vector<20x128xf32>
    %20 = arith.addf %18, %19 : vector<20x128xf32>
    %cst_12 = arith.constant 0.000000e+00 : f32
    %21 = vector.broadcast %cst_12 : f32 to vector<20x128xf32>
    %22 = arith.maximumf %20, %21 : vector<20x128xf32>
    %23 = vector.extract_strided_slice %22 {offsets = [0, 0], sizes = [19, 128], strides = [1, 1]} : vector<20x128xf32> to vector<19x128xf32>
    %24 = vector.extract_strided_slice %22 {offsets = [1, 0], sizes = [19, 128], strides = [1, 1]} : vector<20x128xf32> to vector<19x128xf32>
    %25 = arith.maximumf %23, %24 : vector<19x128xf32>
    %c0_13 = arith.constant 0 : index
    %c0_14 = arith.constant 0 : index
    %26 = vector.load %arg8[%c0_13, %c0_14] : memref<16x19xf32, #tpu.memory_space<vmem>>, vector<16x19xf32>
    %cst_15 = arith.constant dense<0.000000e+00> : vector<16x128xf32>
    %27 = tpu.matmul %26, %25, %cst_15 {dimension_numbers = #tpu.dot_dimension_numbers<[1], [0], [0], [1], [0, 0, 1, 1], [], []>} : vector<16x19xf32>, vector<19x128xf32>, vector<16x128xf32> -> vector<16x128xf32>
    %c1 = arith.constant 1 : index
    %c0_16 = arith.constant 0 : index
    %28 = vector.load %arg6[%c1, %c0_16] : memref<8x128xf32, #tpu.memory_space<vmem>>, vector<1x128xf32>
    %29 = vector.extract_strided_slice %27 {offsets = [0, 0], sizes = [12, 128], strides = [1, 1]} : vector<16x128xf32> to vector<12x128xf32>
    %30 = vector.extract_strided_slice %27 {offsets = [1, 0], sizes = [12, 128], strides = [1, 1]} : vector<16x128xf32> to vector<12x128xf32>
    %31 = vector.extract_strided_slice %27 {offsets = [2, 0], sizes = [12, 128], strides = [1, 1]} : vector<16x128xf32> to vector<12x128xf32>
    %32 = vector.extract_strided_slice %27 {offsets = [3, 0], sizes = [12, 128], strides = [1, 1]} : vector<16x128xf32> to vector<12x128xf32>
    %33 = vector.extract_strided_slice %27 {offsets = [4, 0], sizes = [12, 128], strides = [1, 1]} : vector<16x128xf32> to vector<12x128xf32>
    %34 = tpu.concatenate %29, %30, %31, %32, %33 in 1 : vector<12x128xf32>, vector<12x128xf32>, vector<12x128xf32>, vector<12x128xf32>, vector<12x128xf32> -> vector<12x640xf32>
    %c0_17 = arith.constant 0 : index
    %c0_18 = arith.constant 0 : index
    %35 = vector.load %arg3[%c0_17, %c0_18] : memref<640x128xf32, #tpu.memory_space<vmem>>, vector<640x128xf32>
    %cst_19 = arith.constant dense<0.000000e+00> : vector<12x128xf32>
    %36 = tpu.matmul %34, %35, %cst_19 {dimension_numbers = #tpu.dot_dimension_numbers<[1], [0], [0], [1], [0, 0, 1, 1], [], []>} : vector<12x640xf32>, vector<640x128xf32>, vector<12x128xf32> -> vector<12x128xf32>
    %37 = vector.broadcast %28 : vector<1x128xf32> to vector<12x128xf32>
    %38 = arith.addf %36, %37 : vector<12x128xf32>
    %cst_20 = arith.constant 0.000000e+00 : f32
    %39 = vector.broadcast %cst_20 : f32 to vector<12x128xf32>
    %40 = arith.maximumf %38, %39 : vector<12x128xf32>
    %41 = vector.extract_strided_slice %40 {offsets = [0, 0], sizes = [11, 128], strides = [1, 1]} : vector<12x128xf32> to vector<11x128xf32>
    %42 = vector.extract_strided_slice %40 {offsets = [1, 0], sizes = [11, 128], strides = [1, 1]} : vector<12x128xf32> to vector<11x128xf32>
    %43 = arith.maximumf %41, %42 : vector<11x128xf32>
    %c0_21 = arith.constant 0 : index
    %c0_22 = arith.constant 0 : index
    %44 = vector.load %arg9[%c0_21, %c0_22] : memref<4x11xf32, #tpu.memory_space<vmem>>, vector<4x11xf32>
    %cst_23 = arith.constant dense<0.000000e+00> : vector<4x128xf32>
    %45 = tpu.matmul %44, %43, %cst_23 {dimension_numbers = #tpu.dot_dimension_numbers<[1], [0], [0], [1], [0, 0, 1, 1], [], []>} : vector<4x11xf32>, vector<11x128xf32>, vector<4x128xf32> -> vector<4x128xf32>
    %c0_24 = arith.constant 0 : index
    %c0_25 = arith.constant 0 : index
    %46 = vector.load %arg4[%c0_24, %c0_25] : memref<128x128xf32, #tpu.memory_space<vmem>>, vector<128x128xf32>
    %cst_26 = arith.constant dense<0.000000e+00> : vector<4x128xf32>
    %47 = tpu.matmul %45, %46, %cst_26 {dimension_numbers = #tpu.dot_dimension_numbers<[1], [0], [0], [1], [0, 0, 1, 1], [], []>} : vector<4x128xf32>, vector<128x128xf32>, vector<4x128xf32> -> vector<4x128xf32>
    %48 = vector.extract_strided_slice %47 {offsets = [0, 0], sizes = [2, 64], strides = [1, 1]} : vector<4x128xf32> to vector<2x64xf32>
    %49 = vector.extract_strided_slice %47 {offsets = [2, 64], sizes = [2, 64], strides = [1, 1]} : vector<4x128xf32> to vector<2x64xf32>
    %50 = arith.addf %48, %49 : vector<2x64xf32>
    %c2 = arith.constant 2 : index
    %c0_27 = arith.constant 0 : index
    %51 = vector.load %arg6[%c2, %c0_27] : memref<8x128xf32, #tpu.memory_space<vmem>>, vector<1x64xf32>
    %52 = vector.broadcast %51 : vector<1x64xf32> to vector<2x64xf32>
    %53 = arith.addf %50, %52 : vector<2x64xf32>
    %cst_28 = arith.constant 0.000000e+00 : f32
    %54 = vector.broadcast %cst_28 : f32 to vector<2x64xf32>
    %55 = arith.maximumf %53, %54 : vector<2x64xf32>
    %c0_29 = arith.constant 0 : index
    %c0_30 = arith.constant 0 : index
    %56 = vector.load %arg5[%c0_29, %c0_30] : memref<64x128xf32, #tpu.memory_space<vmem>>, vector<64x128xf32>
    %cst_31 = arith.constant dense<0.000000e+00> : vector<2x128xf32>
    %57 = tpu.matmul %55, %56, %cst_31 {dimension_numbers = #tpu.dot_dimension_numbers<[1], [0], [0], [1], [0, 0, 1, 1], [], []>} : vector<2x64xf32>, vector<64x128xf32>, vector<2x128xf32> -> vector<2x128xf32>
    %c3 = arith.constant 3 : index
    %c0_32 = arith.constant 0 : index
    %58 = vector.load %arg6[%c3, %c0_32] : memref<8x128xf32, #tpu.memory_space<vmem>>, vector<1x128xf32>
    %59 = vector.broadcast %58 : vector<1x128xf32> to vector<2x128xf32>
    %60 = arith.addf %57, %59 : vector<2x128xf32>
    %c0_33 = arith.constant 0 : index
    %c0_34 = arith.constant 0 : index
    %61 = vector.load %arg10[%c0_33, %c0_34] : memref<2x128xf32, #tpu.memory_space<vmem>>, vector<2x128xf32>
    tpu.vector_store %arg10[%c0_33, %c0_34], %60 {strides = array<i32>} : memref<2x128xf32, #tpu.memory_space<vmem>>, vector<2x128xf32>,
    return
  }
}

</mosaic_0001>

<llo_original>
// kernel: tpu_custom_call.1
$region0: #{tpu_custom_call.1}
  #allocation0 [shape = 'u32[]', space=smem, size = 0x4, offset = 0x4, fixed_abs, tag = 'smem constant byte address 0x4 - core index']
  #allocation1 [shape = 'u32[144,128]{1,0:T(1,128)}', space=vmem, size = 0x12000, scoped, tag = 'internal scratch']
  %s0 = inlined_call_operand.vmem [shape: f32[36,6], index: 0, kind: input, shape index: {}]
  %s1 = inlined_call_operand.hbm [shape: f32[6,128], index: 1, kind: input, shape index: {}]
  %s2 = inlined_call_operand.hbm [shape: f32[640,128], index: 2, kind: input, shape index: {}]
  %s3 = inlined_call_operand.hbm [shape: f32[640,128], index: 3, kind: input, shape index: {}]
  %s4 = inlined_call_operand.hbm [shape: f32[128,128], index: 4, kind: input, shape index: {}]
  %s5 = inlined_call_operand.vmem [shape: f32[64,128], index: 5, kind: input, shape index: {}]
  %s6 = inlined_call_operand.hbm [shape: f32[8,128], index: 6, kind: input, shape index: {}]
  %s7 = inlined_call_operand.hbm [shape: f32[24,35], index: 7, kind: input, shape index: {}]
  %s8 = inlined_call_operand.hbm [shape: f32[16,19], index: 8, kind: input, shape index: {}]
  %s9 = inlined_call_operand.vmem [shape: f32[4,11], index: 9, kind: input, shape index: {}]
  %s10 = inlined_call_operand.hbm [shape: f32[2,128], index: 10, kind: output, shape index: {}]
  %s11 = sld [smem:[#allocation0]]
  $region78: #{tpu_custom_call.1} parent=0
    _
  %s13 = ssub.s32 1, %s11
  %s14 = scalar_select 0, %s13, %s11
  $region1: #{tpu_custom_call.1} parent=0
    #allocation2 [shape = 'u8[4096]{0}', space=vmem, size = 0x1000, scoped, tag = 'input window, operand 1, single buffered']
    #allocation3 [shape = 's32[1]{0}', space=sflag, size = 0x4, scoped, tag = 'scoped memory for tpu_custom_call.1']
    #allocation4 [shape = 's32[1]{0}', space=sflag, size = 0x4, scoped, tag = 'scoped memory for tpu_custom_call.1']
    #allocation5 [shape = 'u8[327680]{0}', space=vmem, size = 0x50000, scoped, tag = 'input window, operand 2, single buffered']
    #allocation6 [shape = 's32[1]{0}', space=sflag, size = 0x4, scoped, tag = 'scoped memory for tpu_custom_call.1']
    #allocation7 [shape = 'u8[327680]{0}', space=vmem, size = 0x50000, scoped, tag = 'input window, operand 3, single buffered']
    #allocation8 [shape = 'u8[65536]{0}', space=vmem, size = 0x10000, scoped, tag = 'input window, operand 4, single buffered']
    #allocation9 [shape = 's32[1]{0}', space=sflag, size = 0x4, scoped, tag = 'scoped memory for tpu_custom_call.1']
    #allocation10 [shape = 'u8[4096]{0}', space=vmem, size = 0x1000, scoped, tag = 'input window, operand 6, single buffered']
    #allocation11 [shape = 'u8[12288]{0}', space=vmem, size = 0x3000, scoped, tag = 'input window, operand 7, single buffered']
    #allocation12 [shape = 's32[1]{0}', space=sflag, size = 0x4, scoped, tag = 'scoped memory for tpu_custom_call.1']
    #allocation13 [shape = 'u8[8192]{0}', space=vmem, size = 0x2000, scoped, tag = 'input window, operand 8, single buffered']
    #allocation14 [shape = 'u8[1024]{0}', space=vmem, size = 0x400, scoped, tag = 'output window, operand 0, single buffered']
    %15 = vsyncpa [#allocation3], 0
    %16 = vsyncpa [#allocation6], 0
    %17 = vsyncpa [#allocation9], 0
    %18 = vsyncpa [#allocation12], 0
    %19 = vsyncpa [#allocation4], 0
    // Predicated region
    $region2: #{tpu_custom_call.1} parent=1 // pred_check
      _
    $region3: #{tpu_custom_call.1} parent=1 // pred_check_branch
      %21 = sbr.rel (0) target = $region5
    $region4: #{tpu_custom_call.1} parent=1 // pred_region
      _
    $region5: #{tpu_custom_call.1} parent=1 // pred_fallthru
      _
    // Predicated region
    $region6: #{tpu_custom_call.1} parent=1 // pred_check
      _
    $region7: #{tpu_custom_call.1} parent=1 // pred_check_branch
      %23 = sbr.rel (0) target = $region9
    $region8: #{tpu_custom_call.1} parent=1 // pred_region
      %s25 = ssub.s32 128, 128
      %26 = vsyncadd [#allocation3], %s25
      %s28 = sshll.u32 [#allocation2], 4
      %s29 = int_to_ptr.vmem [resolvable:$true] %s28
      %31 = dma.hbm_to_vmem [thread:$0]  %s1, 128, %s29, [#allocation3]
    $region9: #{tpu_custom_call.1} parent=1 // pred_fallthru
      _
    // Predicated region
    $region10: #{tpu_custom_call.1} parent=1 // pred_check
      _
    $region11: #{tpu_custom_call.1} parent=1 // pred_check_branch
      %33 = sbr.rel (0) target = $region13
    $region12: #{tpu_custom_call.1} parent=1 // pred_region
      %s35 = ssub.s32 10240, 10240
      %36 = vsyncadd [#allocation6], %s35
      %s37 = sshll.u32 [#allocation5], 4
      %s38 = int_to_ptr.vmem [resolvable:$true] %s37
      %43 = dma.hbm_to_vmem [thread:$0]  %s2, 10240, %s38, [#allocation6], 128, 128, 8
    $region13: #{tpu_custom_call.1} parent=1 // pred_fallthru
      _
    // Predicated region
    $region14: #{tpu_custom_call.1} parent=1 // pred_check
      _
    $region15: #{tpu_custom_call.1} parent=1 // pred_check_branch
      %45 = sbr.rel (0) target = $region17
    $region16: #{tpu_custom_call.1} parent=1 // pred_region
      %s47 = ssub.s32 10240, 10240
      %48 = vsyncadd [#allocation6], %s47
      %s49 = sshll.u32 [#allocation7], 4
      %s50 = int_to_ptr.vmem [resolvable:$true] %s49
      %55 = dma.hbm_to_vmem [thread:$0]  %s3, 10240, %s50, [#allocation6], 128, 128, 8
    $region17: #{tpu_custom_call.1} parent=1 // pred_fallthru
      _
    // Predicated region
    $region18: #{tpu_custom_call.1} parent=1 // pred_check
      _
    $region19: #{tpu_custom_call.1} parent=1 // pred_check_branch
      %57 = sbr.rel (0) target = $region21
    $region20: #{tpu_custom_call.1} parent=1 // pred_region
      %s59 = ssub.s32 2048, 2048
      %60 = vsyncadd [#allocation9], %s59
      %s61 = sshll.u32 [#allocation8], 4
      %s62 = int_to_ptr.vmem [resolvable:$true] %s61
      %67 = dma.hbm_to_vmem [thread:$0]  %s4, 2048, %s62, [#allocation9], 128, 128, 8
    $region21: #{tpu_custom_call.1} parent=1 // pred_fallthru
      _
    // Predicated region
    $region22: #{tpu_custom_call.1} parent=1 // pred_check
      _
    $region23: #{tpu_custom_call.1} parent=1 // pred_check_branch
      %69 = sbr.rel (0) target = $region25
    $region24: #{tpu_custom_call.1} parent=1 // pred_region
      _
    $region25: #{tpu_custom_call.1} parent=1 // pred_fallthru
      _
    // Predicated region
    $region26: #{tpu_custom_call.1} parent=1 // pred_check
      _
    $region27: #{tpu_custom_call.1} parent=1 // pred_check_branch
      %71 = sbr.rel (0) target = $region29
    $region28: #{tpu_custom_call.1} parent=1 // pred_region
      %s73 = ssub.s32 128, 128
      %74 = vsyncadd [#allocation9], %s73
      %s76 = sshll.u32 [#allocation10], 4
      %s77 = int_to_ptr.vmem [resolvable:$true] %s76
      %79 = dma.hbm_to_vmem [thread:$0]  %s6, 128, %s77, [#allocation9]
    $region29: #{tpu_custom_call.1} parent=1 // pred_fallthru
      _
    // Predicated region
    $region30: #{tpu_custom_call.1} parent=1 // pred_check
      _
    $region31: #{tpu_custom_call.1} parent=1 // pred_check_branch
      %81 = sbr.rel (0) target = $region33
    $region32: #{tpu_custom_call.1} parent=1 // pred_region
      %s83 = ssub.s32 384, 384
      %84 = vsyncadd [#allocation12], %s83
      %s85 = sshll.u32 [#allocation11], 4
      %s86 = int_to_ptr.vmem [resolvable:$true] %s85
      %91 = dma.hbm_to_vmem [thread:$0]  %s7, 384, %s86, [#allocation12], 128, 128, 8
    $region33: #{tpu_custom_call.1} parent=1 // pred_fallthru
      _
    // Predicated region
    $region34: #{tpu_custom_call.1} parent=1 // pred_check
      _
    $region35: #{tpu_custom_call.1} parent=1 // pred_check_branch
      %93 = sbr.rel (0) target = $region37
    $region36: #{tpu_custom_call.1} parent=1 // pred_region
      %s95 = ssub.s32 256, 256
      %96 = vsyncadd [#allocation12], %s95
      %s97 = sshll.u32 [#allocation13], 4
      %s98 = int_to_ptr.vmem [resolvable:$true] %s97
      %103 = dma.hbm_to_vmem [thread:$0]  %s8, 256, %s98, [#allocation12], 128, 128, 8
    $region37: #{tpu_custom_call.1} parent=1 // pred_fallthru
      _
    // Predicated region
    $region38: #{tpu_custom_call.1} parent=1 // pred_check
      _
    $region39: #{tpu_custom_call.1} parent=1 // pred_check_branch
      %105 = sbr.rel (0) target = $region41
    $region40: #{tpu_custom_call.1} parent=1 // pred_region
      _
    $region41: #{tpu_custom_call.1} parent=1 // pred_fallthru
      _
    // Predicated region
    $region42: #{tpu_custom_call.1} parent=1 // pred_check
      _
    $region43: #{tpu_custom_call.1} parent=1 // pred_check_branch
      %107 = sbr.rel (0) target = $region45
    $region44: #{tpu_custom_call.1} parent=1 // pred_region
      %108 = dma.done [#allocation3], 128
    $region45: #{tpu_custom_call.1} parent=1 // pred_fallthru
      _
    // Predicated region
    $region46: #{tpu_custom_call.1} parent=1 // pred_check
      _
    $region47: #{tpu_custom_call.1} parent=1 // pred_check_branch
      %110 = sbr.rel (0) target = $region49
    $region48: #{tpu_custom_call.1} parent=1 // pred_region
      %111 = dma.done [#allocation6], 10240
    $region49: #{tpu_custom_call.1} parent=1 // pred_fallthru
      _
    // Predicated region
    $region50: #{tpu_custom_call.1} parent=1 // pred_check
      _
    $region51: #{tpu_custom_call.1} parent=1 // pred_check_branch
      %113 = sbr.rel (0) target = $region53
    $region52: #{tpu_custom_call.1} parent=1 // pred_region
      %114 = dma.done [#allocation6], 10240
    $region53: #{tpu_custom_call.1} parent=1 // pred_fallthru
      _
    // Predicated region
    $region54: #{tpu_custom_call.1} parent=1 // pred_check
      _
    $region55: #{tpu_custom_call.1} parent=1 // pred_check_branch
      %116 = sbr.rel (0) target = $region57
    $region56: #{tpu_custom_call.1} parent=1 // pred_region
      %117 = dma.done [#allocation9], 2048
    $region57: #{tpu_custom_call.1} parent=1 // pred_fallthru
      _
    // Predicated region
    $region58: #{tpu_custom_call.1} parent=1 // pred_check
      _
    $region59: #{tpu_custom_call.1} parent=1 // pred_check_branch
      %119 = sbr.rel (0) target = $region61
    $region60: #{tpu_custom_call.1} parent=1 // pred_region
      %120 = dma.done [#allocation9], 128
    $region61: #{tpu_custom_call.1} parent=1 // pred_fallthru
      _
    // Predicated region
    $region62: #{tpu_custom_call.1} parent=1 // pred_check
      _
    $region63: #{tpu_custom_call.1} parent=1 // pred_check_branch
      %122 = sbr.rel (0) target = $region65
    $region64: #{tpu_custom_call.1} parent=1 // pred_region
      %123 = dma.done [#allocation12], 384
    $region65: #{tpu_custom_call.1} parent=1 // pred_fallthru
      _
    // Predicated region
    $region66: #{tpu_custom_call.1} parent=1 // pred_check
      _
    $region67: #{tpu_custom_call.1} parent=1 // pred_check_branch
      %125 = sbr.rel (0) target = $region69
    $region68: #{tpu_custom_call.1} parent=1 // pred_region
      %126 = dma.done [#allocation12], 256
    $region69: #{tpu_custom_call.1} parent=1 // pred_fallthru
      _
    %v127 = vld [vmem:[%s0] sm:$0xff]
    %v128 = vld [vmem:[%s0 + $0x8] sm:$0xff]
    %v129 = vld [vmem:[%s0 + $0x10] sm:$0xff]
    %v130 = vld [vmem:[%s0 + $0x18] sm:$0xff]
    %v131 = vld [vmem:[%s0 + $0x20] sm:$0xf]
    %v132 = vld [vmem:[#allocation2] sm:$0x3f]
    %vm133 = vcmask 48128
    %v135 = vsel %vm133, %v127, 0
    %v138 = vsel %vm133, %v128, 0
    %v141 = vsel %vm133, %v129, 0
    %v144 = vsel %vm133, %v130, 0
    %v147 = vsel %vm133, %v131, 0
    %vm149 = vcmask 1045504
    %v151 = vsel %vm149, %v132, 0
    %153 = vmatprep.subr.mxu0 0.0
    %154 = vmatpush1.msra.mxu0 %v151
    %155 = vmatprep.subr.mxu0 0.0
    %156 = vmatpush1.msra.mxu0 0.0
    %157 = vmatprep.subr.mxu0 0.0
    %158 = vmatpush1.msra.mxu0 0.0
    %159 = vmatprep.subr.mxu0 0.0
    %160 = vmatpush1.msra.mxu0 0.0
    %161 = vmatprep.subr.mxu0 0.0
    %162 = vmatpush1.msra.mxu0 0.0
    %163 = vmatprep.subr.mxu0 0.0
    %164 = vmatpush1.msra.mxu0 0.0
    %165 = vmatprep.subr.mxu0 0.0
    %166 = vmatpush1.msra.mxu0 0.0
    %167 = vmatprep.subr.mxu0 0.0
    %168 = vmatpush1.msra.mxu0 0.0
    %169 = vmatprep.subr.mxu0 0.0
    %170 = vmatpush1.msra.mxu0 0.0
    %171 = vmatprep.subr.mxu0 0.0
    %172 = vmatpush1.msra.mxu0 0.0
    %173 = vmatprep.subr.mxu0 0.0
    %174 = vmatpush1.msra.mxu0 0.0
    %175 = vmatprep.subr.mxu0 0.0
    %176 = vmatpush1.msra.mxu0 0.0
    %177 = vmatprep.subr.mxu0 0.0
    %178 = vmatpush1.msra.mxu0 0.0
    %179 = vmatprep.subr.mxu0 0.0
    %180 = vmatpush1.msra.mxu0 0.0
    %181 = vmatprep.subr.mxu0 0.0
    %182 = vmatpush1.msra.mxu0 0.0
    %183 = vmatprep.subr.mxu0 0.0
    %184 = vmatpush1.msra.mxu0 0.0
    %185 = vmatprep.subr.mxu0 0.0
    %186 = vmatpush1.msra.mxu0 0.0
    %187 = vmatprep.subr.mxu0 0.0
    %188 = vmatpush1.msra.mxu0 0.0
    %189 = vmatprep.subr.mxu0 0.0
    %190 = vmatpush1.msra.mxu0 0.0
    %191 = vmatprep.subr.mxu0 0.0
    %192 = vmatpush1.msra.mxu0 0.0
    %193 = vmatprep.subr.mxu0 0.0
    %194 = vmatpush1.msra.mxu0 0.0
    %195 = vmatprep.subr.mxu0 0.0
    %196 = vmatpush1.msra.mxu0 0.0
    %197 = vmatprep.subr.mxu0 0.0
    %198 = vmatpush1.msra.mxu0 0.0
    %199 = vmatprep.subr.mxu0 0.0
    %200 = vmatpush1.msra.mxu0 0.0
    %201 = vmatprep.subr.mxu0 0.0
    %202 = vmatpush1.msra.mxu0 0.0
    %203 = vmatprep.subr.mxu0 0.0
    %204 = vmatpush1.msra.mxu0 0.0
    %205 = vmatprep.subr.mxu0 0.0
    %206 = vmatpush1.msra.mxu0 0.0
    %207 = vmatprep.subr.mxu0 0.0
    %208 = vmatpush1.msra.mxu0 0.0
    %209 = vmatprep.subr.mxu0 0.0
    %210 = vmatpush1.msra.mxu0 0.0
    %211 = vmatprep.subr.mxu0 0.0
    %212 = vmatpush1.msra.mxu0 0.0
    %213 = vmatprep.subr.mxu0 0.0
    %214 = vmatpush1.msra.mxu0 0.0
    %215 = vmatprep.subr.mxu0 0.0
    %216 = vmatpush1.msra.mxu0 0.0
    %217 = vmatprep.mubr.f32.mxu0 0.0
    %218 = vmatmul.mubr.f32.gmra.mrb[0].mxu0 %v135
    %v219 = vpop.f32.mrb[0].mxu0
    %v220 = vadd.f32 0.0, %v219
    %v221 = vpop.f32.mrb[0].mxu0
    %222 = vmatprep.mubr.f32.mxu0 0.0
    %223 = vmatmul.mubr.f32.gmra.mrb[0].mxu0 %v138
    %v224 = vpop.f32.mrb[0].mxu0
    %v225 = vadd.f32 0.0, %v224
    %v226 = vpop.f32.mrb[0].mxu0
    %227 = vmatprep.mubr.f32.mxu0 0.0
    %228 = vmatmul.mubr.f32.gmra.mrb[0].mxu0 %v141
    %v229 = vpop.f32.mrb[0].mxu0
    %v230 = vadd.f32 0.0, %v229
    %v231 = vpop.f32.mrb[0].mxu0
    %232 = vmatprep.mubr.f32.mxu0 0.0
    %233 = vmatmul.mubr.f32.gmra.mrb[0].mxu0 %v144
    %v234 = vpop.f32.mrb[0].mxu0
    %v235 = vadd.f32 0.0, %v234
    %v236 = vpop.f32.mrb[0].mxu0
    %237 = vmatprep.mubr.f32.mxu0 0.0
    %238 = vmatmul.mubr.f32.gmra.mrb[0].mxu0 %v147
    %v239 = vpop.f32.mrb[0].mxu0
    %v240 = vadd.f32 0.0, %v239
    %v241 = vpop.f32.mrb[0].mxu0
    %242 = vdwg.mxu0
    %v243 = vmax.f32 %v220, 0.0
    %v244 = vmax.f32 %v225, 0.0
    %v245 = vmax.f32 %v230, 0.0
    %v246 = vmax.f32 %v235, 0.0
    %v247 = vmax.f32 %v240, 0.0
    %vm253 = vcmask 1046528
    %v254 = vrot.slane %v243, 1
    %v255 = vrot.slane %v244, 1
    %v256 = vsel %vm253, %v254, %v255
    %v257 = vrot.slane %v245, 1
    %v258 = vsel %vm253, %v255, %v257
    %v259 = vrot.slane %v246, 1
    %v260 = vsel %vm253, %v257, %v259
    %v261 = vrot.slane %v247, 1
    %v262 = vsel %vm253, %v259, %v261
    %v268 = vmax.f32 %v243, %v256
    %v269 = vmax.f32 %v244, %v258
    %v270 = vmax.f32 %v245, %v260
    %v271 = vmax.f32 %v246, %v262
    %v272 = vmax.f32 %v247, %v261
    %v273 = vld [vmem:[#allocation11] sm:$0xff]
    %v274 = vld [vmem:[#allocation11 + $0x8] sm:$0xff]
    %v275 = vld [vmem:[#allocation11 + $0x10] sm:$0xff]
    %vm276 = vcmask 285696
    %v278 = vsel %vm276, %v273, 0
    %v281 = vsel %vm276, %v274, 0
    %v284 = vsel %vm276, %v275, 0
    %vm286 = vcmask 1042432
    %v288 = vsel %vm286, %v272, 0
    %290 = vmatprep.subr.mxu0 0.0
    %291 = vmatpush1.msra.mxu0 %v268
    %292 = vmatprep.subr.mxu0 0.0
    %293 = vmatpush1.msra.mxu0 %v269
    %294 = vmatprep.subr.mxu0 0.0
    %295 = vmatpush1.msra.mxu0 %v270
    %296 = vmatprep.subr.mxu0 0.0
    %297 = vmatpush1.msra.mxu0 %v271
    %298 = vmatprep.subr.mxu0 0.0
    %299 = vmatpush1.msra.mxu0 %v288
    %300 = vmatprep.subr.mxu0 0.0
    %301 = vmatpush1.msra.mxu0 0.0
    %302 = vmatprep.subr.mxu0 0.0
    %303 = vmatpush1.msra.mxu0 0.0
    %304 = vmatprep.subr.mxu0 0.0
    %305 = vmatpush1.msra.mxu0 0.0
    %306 = vmatprep.subr.mxu0 0.0
    %307 = vmatpush1.msra.mxu0 0.0
    %308 = vmatprep.subr.mxu0 0.0
    %309 = vmatpush1.msra.mxu0 0.0
    %310 = vmatprep.subr.mxu0 0.0
    %311 = vmatpush1.msra.mxu0 0.0
    %312 = vmatprep.subr.mxu0 0.0
    %313 = vmatpush1.msra.mxu0 0.0
    %314 = vmatprep.subr.mxu0 0.0
    %315 = vmatpush1.msra.mxu0 0.0
    %316 = vmatprep.subr.mxu0 0.0
    %317 = vmatpush1.msra.mxu0 0.0
    %318 = vmatprep.subr.mxu0 0.0
    %319 = vmatpush1.msra.mxu0 0.0
    %320 = vmatprep.subr.mxu0 0.0
    %321 = vmatpush1.msra.mxu0 0.0
    %322 = vmatprep.subr.mxu0 0.0
    %323 = vmatpush1.msra.mxu0 0.0
    %324 = vmatprep.subr.mxu0 0.0
    %325 = vmatpush1.msra.mxu0 0.0
    %326 = vmatprep.subr.mxu0 0.0
    %327 = vmatpush1.msra.mxu0 0.0
    %328 = vmatprep.subr.mxu0 0.0
    %329 = vmatpush1.msra.mxu0 0.0
    %330 = vmatprep.subr.mxu0 0.0
    %331 = vmatpush1.msra.mxu0 0.0
    %332 = vmatprep.subr.mxu0 0.0
    %333 = vmatpush1.msra.mxu0 0.0
    %334 = vmatprep.subr.mxu0 0.0
    %335 = vmatpush1.msra.mxu0 0.0
    %336 = vmatprep.subr.mxu0 0.0
    %337 = vmatpush1.msra.mxu0 0.0
    %338 = vmatprep.subr.mxu0 0.0
    %339 = vmatpush1.msra.mxu0 0.0
    %340 = vmatprep.subr.mxu0 0.0
    %341 = vmatpush1.msra.mxu0 0.0
    %342 = vmatprep.subr.mxu0 0.0
    %343 = vmatpush1.msra.mxu0 0.0
    %344 = vmatprep.subr.mxu0 0.0
    %345 = vmatpush1.msra.mxu0 0.0
    %346 = vmatprep.subr.mxu0 0.0
    %347 = vmatpush1.msra.mxu0 0.0
    %348 = vmatprep.subr.mxu0 0.0
    %349 = vmatpush1.msra.mxu0 0.0
    %350 = vmatprep.subr.mxu0 0.0
    %351 = vmatpush1.msra.mxu0 0.0
    %352 = vmatprep.subr.mxu0 0.0
    %353 = vmatpush1.msra.mxu0 0.0
    %354 = vmatprep.mubr.f32.mxu0 0.0
    %355 = vmatmul.mubr.f32.gmra.mrb[0].mxu0 %v278
    %v356 = vpop.f32.mrb[0].mxu0
    %v357 = vadd.f32 0.0, %v356
    %v358 = vpop.f32.mrb[0].mxu0
    %359 = vmatprep.mubr.f32.mxu0 0.0
    %360 = vmatmul.mubr.f32.gmra.mrb[0].mxu0 %v281
    %v361 = vpop.f32.mrb[0].mxu0
    %v362 = vadd.f32 0.0, %v361
    %v363 = vpop.f32.mrb[0].mxu0
    %364 = vmatprep.mubr.f32.mxu0 0.0
    %365 = vmatmul.mubr.f32.gmra.mrb[0].mxu0 %v284
    %v366 = vpop.f32.mrb[0].mxu0
    %v367 = vadd.f32 0.0, %v366
    %v368 = vpop.f32.mrb[0].mxu0
    %369 = vdwg.mxu0
    %v370 = vld [vmem:[#allocation10] sm:$0x1]
    %v374 = vrot.slane %v357, 1
    %v375 = vrot.slane %v362, 1
    %v376 = vsel %vm253, %v374, %v375
    %v377 = vrot.slane %v367, 1
    %v378 = vsel %vm253, %v375, %v377
    %v382 = vrot.slane %v357, 2
    %v383 = vrot.slane %v362, 2
    %v384 = vsel %vm149, %v382, %v383
    %v385 = vrot.slane %v367, 2
    %v386 = vsel %vm149, %v383, %v385
    %vm390 = vcmask 1044480
    %v391 = vrot.slane %v357, 3
    %v392 = vrot.slane %v362, 3
    %v393 = vsel %vm390, %v391, %v392
    %v394 = vrot.slane %v367, 3
    %v395 = vsel %vm390, %v392, %v394
    %vm399 = vcmask 1043456
    %v400 = vrot.slane %v357, 4
    %v401 = vrot.slane %v362, 4
    %v402 = vsel %vm399, %v400, %v401
    %v403 = vrot.slane %v367, 4
    %v404 = vsel %vm399, %v401, %v403
    %v408 = vld [vmem:[#allocation5] sm:$0xff]
    %v409 = vld [vmem:[#allocation5 + $0x8] sm:$0xff]
    %v410 = vld [vmem:[#allocation5 + $0x10] sm:$0xff]
    %v411 = vld [vmem:[#allocation5 + $0x18] sm:$0xff]
    %v412 = vld [vmem:[#allocation5 + $0x20] sm:$0xff]
    %v413 = vld [vmem:[#allocation5 + $0x28] sm:$0xff]
    %v414 = vld [vmem:[#allocation5 + $0x30] sm:$0xff]
    %v415 = vld [vmem:[#allocation5 + $0x38] sm:$0xff]
    %v416 = vld [vmem:[#allocation5 + $0x40] sm:$0xff]
    %v417 = vld [vmem:[#allocation5 + $0x48] sm:$0xff]
    %v418 = vld [vmem:[#allocation5 + $0x50] sm:$0xff]
    %v419 = vld [vmem:[#allocation5 + $0x58] sm:$0xff]
    %v420 = vld [vmem:[#allocation5 + $0x60] sm:$0xff]
    %v421 = vld [vmem:[#allocation5 + $0x68] sm:$0xff]
    %v422 = vld [vmem:[#allocation5 + $0x70] sm:$0xff]
    %v423 = vld [vmem:[#allocation5 + $0x78] sm:$0xff]
    %v424 = vld [vmem:[#allocation5 + $0x80] sm:$0xff]
    %v425 = vld [vmem:[#allocation5 + $0x88] sm:$0xff]
    %v426 = vld [vmem:[#allocation5 + $0x90] sm:$0xff]
    %v427 = vld [vmem:[#allocation5 + $0x98] sm:$0xff]
    %v428 = vld [vmem:[#allocation5 + $0xa0] sm:$0xff]
    %v429 = vld [vmem:[#allocation5 + $0xa8] sm:$0xff]
    %v430 = vld [vmem:[#allocation5 + $0xb0] sm:$0xff]
    %v431 = vld [vmem:[#allocation5 + $0xb8] sm:$0xff]
    %v432 = vld [vmem:[#allocation5 + $0xc0] sm:$0xff]
    %v433 = vld [vmem:[#allocation5 + $0xc8] sm:$0xff]
    %v434 = vld [vmem:[#allocation5 + $0xd0] sm:$0xff]
    %v435 = vld [vmem:[#allocation5 + $0xd8] sm:$0xff]
    %v436 = vld [vmem:[#allocation5 + $0xe0] sm:$0xff]
    %v437 = vld [vmem:[#allocation5 + $0xe8] sm:$0xff]
    %v438 = vld [vmem:[#allocation5 + $0xf0] sm:$0xff]
    %v439 = vld [vmem:[#allocation5 + $0xf8] sm:$0xff]
    %v440 = vld [vmem:[#allocation5 + $0x100] sm:$0xff]
    %v441 = vld [vmem:[#allocation5 + $0x108] sm:$0xff]
    %v442 = vld [vmem:[#allocation5 + $0x110] sm:$0xff]
    %v443 = vld [vmem:[#allocation5 + $0x118] sm:$0xff]
    %v444 = vld [vmem:[#allocation5 + $0x120] sm:$0xff]
    %v445 = vld [vmem:[#allocation5 + $0x128] sm:$0xff]
    %v446 = vld [vmem:[#allocation5 + $0x130] sm:$0xff]
    %v447 = vld [vmem:[#allocation5 + $0x138] sm:$0xff]
    %v448 = vld [vmem:[#allocation5 + $0x140] sm:$0xff]
    %v449 = vld [vmem:[#allocation5 + $0x148] sm:$0xff]
    %v450 = vld [vmem:[#allocation5 + $0x150] sm:$0xff]
    %v451 = vld [vmem:[#allocation5 + $0x158] sm:$0xff]
    %v452 = vld [vmem:[#allocation5 + $0x160] sm:$0xff]
    %v453 = vld [vmem:[#allocation5 + $0x168] sm:$0xff]
    %v454 = vld [vmem:[#allocation5 + $0x170] sm:$0xff]
    %v455 = vld [vmem:[#allocation5 + $0x178] sm:$0xff]
    %v456 = vld [vmem:[#allocation5 + $0x180] sm:$0xff]
    %v457 = vld [vmem:[#allocation5 + $0x188] sm:$0xff]
    %v458 = vld [vmem:[#allocation5 + $0x190] sm:$0xff]
    %v459 = vld [vmem:[#allocation5 + $0x198] sm:$0xff]
    %v460 = vld [vmem:[#allocation5 + $0x1a0] sm:$0xff]
    %v461 = vld [vmem:[#allocation5 + $0x1a8] sm:$0xff]
    %v462 = vld [vmem:[#allocation5 + $0x1b0] sm:$0xff]
    %v463 = vld [vmem:[#allocation5 + $0x1b8] sm:$0xff]
    %v464 = vld [vmem:[#allocation5 + $0x1c0] sm:$0xff]
    %v465 = vld [vmem:[#allocation5 + $0x1c8] sm:$0xff]
    %v466 = vld [vmem:[#allocation5 + $0x1d0] sm:$0xff]
    %v467 = vld [vmem:[#allocation5 + $0x1d8] sm:$0xff]
    %v468 = vld [vmem:[#allocation5 + $0x1e0] sm:$0xff]
    %v469 = vld [vmem:[#allocation5 + $0x1e8] sm:$0xff]
    %v470 = vld [vmem:[#allocation5 + $0x1f0] sm:$0xff]
    %v471 = vld [vmem:[#allocation5 + $0x1f8] sm:$0xff]
    %v472 = vld [vmem:[#allocation5 + $0x200] sm:$0xff]
    %v473 = vld [vmem:[#allocation5 + $0x208] sm:$0xff]
    %v474 = vld [vmem:[#allocation5 + $0x210] sm:$0xff]
    %v475 = vld [vmem:[#allocation5 + $0x218] sm:$0xff]
    %v476 = vld [vmem:[#allocation5 + $0x220] sm:$0xff]
    %v477 = vld [vmem:[#allocation5 + $0x228] sm:$0xff]
    %v478 = vld [vmem:[#allocation5 + $0x230] sm:$0xff]
    %v479 = vld [vmem:[#allocation5 + $0x238] sm:$0xff]
    %v480 = vld [vmem:[#allocation5 + $0x240] sm:$0xff]
    %v481 = vld [vmem:[#allocation5 + $0x248] sm:$0xff]
    %v482 = vld [vmem:[#allocation5 + $0x250] sm:$0xff]
    %v483 = vld [vmem:[#allocation5 + $0x258] sm:$0xff]
    %v484 = vld [vmem:[#allocation5 + $0x260] sm:$0xff]
    %v485 = vld [vmem:[#allocation5 + $0x268] sm:$0xff]
    %v486 = vld [vmem:[#allocation5 + $0x270] sm:$0xff]
    %v487 = vld [vmem:[#allocation5 + $0x278] sm:$0xff]
    %v488 = vlaneseq
    %v489 = vshrl.u32 %v488, 7
    %v490 = vsub.s32 0, %v489
    %v491 = vrot.slane %v370, %v490
    %492 = vmatprep.subr.mxu0 0.0
    %493 = vmatpush1.msra.mxu0 %v408
    %494 = vmatprep.subr.mxu0 0.0
    %495 = vmatpush1.msra.mxu0 %v409
    %496 = vmatprep.subr.mxu0 0.0
    %497 = vmatpush1.msra.mxu0 %v410
    %498 = vmatprep.subr.mxu0 0.0
    %499 = vmatpush1.msra.mxu0 %v411
    %500 = vmatprep.subr.mxu0 0.0
    %501 = vmatpush1.msra.mxu0 %v412
    %502 = vmatprep.subr.mxu0 0.0
    %503 = vmatpush1.msra.mxu0 %v413
    %504 = vmatprep.subr.mxu0 0.0
    %505 = vmatpush1.msra.mxu0 %v414
    %506 = vmatprep.subr.mxu0 0.0
    %507 = vmatpush1.msra.mxu0 %v415
    %508 = vmatprep.subr.mxu0 0.0
    %509 = vmatpush1.msra.mxu0 %v416
    %510 = vmatprep.subr.mxu0 0.0
    %511 = vmatpush1.msra.mxu0 %v417
    %512 = vmatprep.subr.mxu0 0.0
    %513 = vmatpush1.msra.mxu0 %v418
    %514 = vmatprep.subr.mxu0 0.0
    %515 = vmatpush1.msra.mxu0 %v419
    %516 = vmatprep.subr.mxu0 0.0
    %517 = vmatpush1.msra.mxu0 %v420
    %518 = vmatprep.subr.mxu0 0.0
    %519 = vmatpush1.msra.mxu0 %v421
    %520 = vmatprep.subr.mxu0 0.0
    %521 = vmatpush1.msra.mxu0 %v422
    %522 = vmatprep.subr.mxu0 0.0
    %523 = vmatpush1.msra.mxu0 %v423
    %524 = vmatprep.subr.mxu0 0.0
    %525 = vmatpush1.msra.mxu0 %v424
    %526 = vmatprep.subr.mxu0 0.0
    %527 = vmatpush1.msra.mxu0 %v425
    %528 = vmatprep.subr.mxu0 0.0
    %529 = vmatpush1.msra.mxu0 %v426
    %530 = vmatprep.subr.mxu0 0.0
    %531 = vmatpush1.msra.mxu0 %v427
    %532 = vmatprep.subr.mxu0 0.0
    %533 = vmatpush1.msra.mxu0 %v428
    %534 = vmatprep.subr.mxu0 0.0
    %535 = vmatpush1.msra.mxu0 %v429
    %536 = vmatprep.subr.mxu0 0.0
    %537 = vmatpush1.msra.mxu0 %v430
    %538 = vmatprep.subr.mxu0 0.0
    %539 = vmatpush1.msra.mxu0 %v431
    %540 = vmatprep.subr.mxu0 0.0
    %541 = vmatpush1.msra.mxu0 %v432
    %542 = vmatprep.subr.mxu0 0.0
    %543 = vmatpush1.msra.mxu0 %v433
    %544 = vmatprep.subr.mxu0 0.0
    %545 = vmatpush1.msra.mxu0 %v434
    %546 = vmatprep.subr.mxu0 0.0
    %547 = vmatpush1.msra.mxu0 %v435
    %548 = vmatprep.subr.mxu0 0.0
    %549 = vmatpush1.msra.mxu0 %v436
    %550 = vmatprep.subr.mxu0 0.0
    %551 = vmatpush1.msra.mxu0 %v437
    %552 = vmatprep.subr.mxu0 0.0
    %553 = vmatpush1.msra.mxu0 %v438
    %554 = vmatprep.subr.mxu0 0.0
    %555 = vmatpush1.msra.mxu0 %v439
    %556 = vmatprep.mubr.f32.mxu0 %v376
    %557 = vmatmul.mubr.f32.gmra.mrb[0].mxu0 %v357
    %v558 = vpop.f32.mrb[0].mxu0
    %v559 = vadd.f32 %v491, %v558
    %v560 = vpop.f32.mrb[0].mxu0
    %561 = vmatprep.mubr.f32.mxu0 %v378
    %562 = vmatmul.mubr.f32.gmra.mrb[0].mxu0 %v362
    %v563 = vpop.f32.mrb[0].mxu0
    %v564 = vadd.f32 %v491, %v563
    %v565 = vpop.f32.mrb[0].mxu0
    %566 = vmatprep.mubr.f32.mxu0 %v377
    %567 = vmatmul.mubr.f32.gmra.mrb[0].mxu0 %v367
    %v568 = vpop.f32.mrb[0].mxu0
    %v569 = vadd.f32 %v491, %v568
    %v570 = vpop.f32.mrb[0].mxu0
    %571 = vdwg.mxu0
    %572 = vmatprep.subr.mxu0 0.0
    %573 = vmatpush1.msra.mxu0 %v440
    %574 = vmatprep.subr.mxu0 0.0
    %575 = vmatpush1.msra.mxu0 %v441
    %576 = vmatprep.subr.mxu0 0.0
    %577 = vmatpush1.msra.mxu0 %v442
    %578 = vmatprep.subr.mxu0 0.0
    %579 = vmatpush1.msra.mxu0 %v443
    %580 = vmatprep.subr.mxu0 0.0
    %581 = vmatpush1.msra.mxu0 %v444
    %582 = vmatprep.subr.mxu0 0.0
    %583 = vmatpush1.msra.mxu0 %v445
    %584 = vmatprep.subr.mxu0 0.0
    %585 = vmatpush1.msra.mxu0 %v446
    %586 = vmatprep.subr.mxu0 0.0
    %587 = vmatpush1.msra.mxu0 %v447
    %588 = vmatprep.subr.mxu0 0.0
    %589 = vmatpush1.msra.mxu0 %v448
    %590 = vmatprep.subr.mxu0 0.0
    %591 = vmatpush1.msra.mxu0 %v449
    %592 = vmatprep.subr.mxu0 0.0
    %593 = vmatpush1.msra.mxu0 %v450
    %594 = vmatprep.subr.mxu0 0.0
    %595 = vmatpush1.msra.mxu0 %v451
    %596 = vmatprep.subr.mxu0 0.0
    %597 = vmatpush1.msra.mxu0 %v452
    %598 = vmatprep.subr.mxu0 0.0
    %599 = vmatpush1.msra.mxu0 %v453
    %600 = vmatprep.subr.mxu0 0.0
    %601 = vmatpush1.msra.mxu0 %v454
    %602 = vmatprep.subr.mxu0 0.0
    %603 = vmatpush1.msra.mxu0 %v455
    %604 = vmatprep.subr.mxu0 0.0
    %605 = vmatpush1.msra.mxu0 %v456
    %606 = vmatprep.subr.mxu0 0.0
    %607 = vmatpush1.msra.mxu0 %v457
    %608 = vmatprep.subr.mxu0 0.0
    %609 = vmatpush1.msra.mxu0 %v458
    %610 = vmatprep.subr.mxu0 0.0
    %611 = vmatpush1.msra.mxu0 %v459
    %612 = vmatprep.subr.mxu0 0.0
    %613 = vmatpush1.msra.mxu0 %v460
    %614 = vmatprep.subr.mxu0 0.0
    %615 = vmatpush1.msra.mxu0 %v461
    %616 = vmatprep.subr.mxu0 0.0
    %617 = vmatpush1.msra.mxu0 %v462
    %618 = vmatprep.subr.mxu0 0.0
    %619 = vmatpush1.msra.mxu0 %v463
    %620 = vmatprep.subr.mxu0 0.0
    %621 = vmatpush1.msra.mxu0 %v464
    %622 = vmatprep.subr.mxu0 0.0
    %623 = vmatpush1.msra.mxu0 %v465
    %624 = vmatprep.subr.mxu0 0.0
    %625 = vmatpush1.msra.mxu0 %v466
    %626 = vmatprep.subr.mxu0 0.0
    %627 = vmatpush1.msra.mxu0 %v467
    %628 = vmatprep.subr.mxu0 0.0
    %629 = vmatpush1.msra.mxu0 %v468
    %630 = vmatprep.subr.mxu0 0.0
    %631 = vmatpush1.msra.mxu0 %v469
    %632 = vmatprep.subr.mxu0 0.0
    %633 = vmatpush1.msra.mxu0 %v470
    %634 = vmatprep.subr.mxu0 0.0
    %635 = vmatpush1.msra.mxu0 %v471
    %636 = vmatprep.mubr.f32.mxu0 %v393
    %637 = vmatmul.mubr.f32.gmra.mrb[0].mxu0 %v384
    %v638 = vpop.f32.mrb[0].mxu0
    %v639 = vadd.f32 %v559, %v638
    %v640 = vpop.f32.mrb[0].mxu0
    %641 = vmatprep.mubr.f32.mxu0 %v395
    %642 = vmatmul.mubr.f32.gmra.mrb[0].mxu0 %v386
    %v643 = vpop.f32.mrb[0].mxu0
    %v644 = vadd.f32 %v564, %v643
    %v645 = vpop.f32.mrb[0].mxu0
    %646 = vmatprep.mubr.f32.mxu0 %v394
    %647 = vmatmul.mubr.f32.gmra.mrb[0].mxu0 %v385
    %v648 = vpop.f32.mrb[0].mxu0
    %v649 = vadd.f32 %v569, %v648
    %v650 = vpop.f32.mrb[0].mxu0
    %651 = vdwg.mxu0
    %652 = vmatprep.subr.mxu0 0.0
    %653 = vmatpush1.msra.mxu0 %v472
    %654 = vmatprep.subr.mxu0 0.0
    %655 = vmatpush1.msra.mxu0 %v473
    %656 = vmatprep.subr.mxu0 0.0
    %657 = vmatpush1.msra.mxu0 %v474
    %658 = vmatprep.subr.mxu0 0.0
    %659 = vmatpush1.msra.mxu0 %v475
    %660 = vmatprep.subr.mxu0 0.0
    %661 = vmatpush1.msra.mxu0 %v476
    %662 = vmatprep.subr.mxu0 0.0
    %663 = vmatpush1.msra.mxu0 %v477
    %664 = vmatprep.subr.mxu0 0.0
    %665 = vmatpush1.msra.mxu0 %v478
    %666 = vmatprep.subr.mxu0 0.0
    %667 = vmatpush1.msra.mxu0 %v479
    %668 = vmatprep.subr.mxu0 0.0
    %669 = vmatpush1.msra.mxu0 %v480
    %670 = vmatprep.subr.mxu0 0.0
    %671 = vmatpush1.msra.mxu0 %v481
    %672 = vmatprep.subr.mxu0 0.0
    %673 = vmatpush1.msra.mxu0 %v482
    %674 = vmatprep.subr.mxu0 0.0
    %675 = vmatpush1.msra.mxu0 %v483
    %676 = vmatprep.subr.mxu0 0.0
    %677 = vmatpush1.msra.mxu0 %v484
    %678 = vmatprep.subr.mxu0 0.0
    %679 = vmatpush1.msra.mxu0 %v485
    %680 = vmatprep.subr.mxu0 0.0
    %681 = vmatpush1.msra.mxu0 %v486
    %682 = vmatprep.subr.mxu0 0.0
    %683 = vmatpush1.msra.mxu0 %v487
    %684 = vmatprep.subr.mxu0 0.0
    %685 = vmatpush1.msra.mxu0 0.0
    %686 = vmatprep.subr.mxu0 0.0
    %687 = vmatpush1.msra.mxu0 0.0
    %688 = vmatprep.subr.mxu0 0.0
    %689 = vmatpush1.msra.mxu0 0.0
    %690 = vmatprep.subr.mxu0 0.0
    %691 = vmatpush1.msra.mxu0 0.0
    %692 = vmatprep.subr.mxu0 0.0
    %693 = vmatpush1.msra.mxu0 0.0
    %694 = vmatprep.subr.mxu0 0.0
    %695 = vmatpush1.msra.mxu0 0.0
    %696 = vmatprep.subr.mxu0 0.0
    %697 = vmatpush1.msra.mxu0 0.0
    %698 = vmatprep.subr.mxu0 0.0
    %699 = vmatpush1.msra.mxu0 0.0
    %700 = vmatprep.subr.mxu0 0.0
    %701 = vmatpush1.msra.mxu0 0.0
    %702 = vmatprep.subr.mxu0 0.0
    %703 = vmatpush1.msra.mxu0 0.0
    %704 = vmatprep.subr.mxu0 0.0
    %705 = vmatpush1.msra.mxu0 0.0
    %706 = vmatprep.subr.mxu0 0.0
    %707 = vmatpush1.msra.mxu0 0.0
    %708 = vmatprep.subr.mxu0 0.0
    %709 = vmatpush1.msra.mxu0 0.0
    %710 = vmatprep.subr.mxu0 0.0
    %711 = vmatpush1.msra.mxu0 0.0
    %712 = vmatprep.subr.mxu0 0.0
    %713 = vmatpush1.msra.mxu0 0.0
    %714 = vmatprep.subr.mxu0 0.0
    %715 = vmatpush1.msra.mxu0 0.0
    %716 = vmatprep.mubr.f32.mxu0 0.0
    %717 = vmatmul.mubr.f32.gmra.mrb[0].mxu0 %v402
    %v718 = vpop.f32.mrb[0].mxu0
    %v719 = vadd.f32 %v639, %v718
    %v720 = vpop.f32.mrb[0].mxu0
    %721 = vmatprep.mubr.f32.mxu0 0.0
    %722 = vmatmul.mubr.f32.gmra.mrb[0].mxu0 %v404
    %v723 = vpop.f32.mrb[0].mxu0
    %v724 = vadd.f32 %v644, %v723
    %v725 = vpop.f32.mrb[0].mxu0
    %726 = vmatprep.mubr.f32.mxu0 0.0
    %727 = vmatmul.mubr.f32.gmra.mrb[0].mxu0 %v403
    %v728 = vpop.f32.mrb[0].mxu0
    %v729 = vadd.f32 %v649, %v728
    %v730 = vpop.f32.mrb[0].mxu0
    %731 = vdwg.mxu0
    %v732 = vmax.f32 %v719, 0.0
    %v733 = vmax.f32 %v724, 0.0
    %v734 = vmax.f32 %v729, 0.0
    %v738 = vrot.slane %v732, 1
    %v739 = vrot.slane %v733, 1
    %v740 = vsel %vm253, %v738, %v739
    %v741 = vrot.slane %v734, 1
    %v742 = vsel %vm253, %v739, %v741
    %v746 = vmax.f32 %v732, %v740
    %v747 = vmax.f32 %v733, %v742
    %v748 = vmax.f32 %v734, %v741
    %v749 = vld [vmem:[#allocation13] sm:$0xff]
    %v750 = vld [vmem:[#allocation13 + $0x8] sm:$0xff]
    %vm751 = vcmask 154624
    %v753 = vsel %vm751, %v749, 0
    %v756 = vsel %vm751, %v750, 0
    %v759 = vsel %vm286, %v748, 0
    %761 = vmatprep.subr.mxu0 0.0
    %762 = vmatpush1.msra.mxu0 %v746
    %763 = vmatprep.subr.mxu0 0.0
    %764 = vmatpush1.msra.mxu0 %v747
    %765 = vmatprep.subr.mxu0 0.0
    %766 = vmatpush1.msra.mxu0 %v759
    %767 = vmatprep.subr.mxu0 0.0
    %768 = vmatpush1.msra.mxu0 0.0
    %769 = vmatprep.subr.mxu0 0.0
    %770 = vmatpush1.msra.mxu0 0.0
    %771 = vmatprep.subr.mxu0 0.0
    %772 = vmatpush1.msra.mxu0 0.0
    %773 = vmatprep.subr.mxu0 0.0
    %774 = vmatpush1.msra.mxu0 0.0
    %775 = vmatprep.subr.mxu0 0.0
    %776 = vmatpush1.msra.mxu0 0.0
    %777 = vmatprep.subr.mxu0 0.0
    %778 = vmatpush1.msra.mxu0 0.0
    %779 = vmatprep.subr.mxu0 0.0
    %780 = vmatpush1.msra.mxu0 0.0
    %781 = vmatprep.subr.mxu0 0.0
    %782 = vmatpush1.msra.mxu0 0.0
    %783 = vmatprep.subr.mxu0 0.0
    %784 = vmatpush1.msra.mxu0 0.0
    %785 = vmatprep.subr.mxu0 0.0
    %786 = vmatpush1.msra.mxu0 0.0
    %787 = vmatprep.subr.mxu0 0.0
    %788 = vmatpush1.msra.mxu0 0.0
    %789 = vmatprep.subr.mxu0 0.0
    %790 = vmatpush1.msra.mxu0 0.0
    %791 = vmatprep.subr.mxu0 0.0
    %792 = vmatpush1.msra.mxu0 0.0
    %793 = vmatprep.subr.mxu0 0.0
    %794 = vmatpush1.msra.mxu0 0.0
    %795 = vmatprep.subr.mxu0 0.0
    %796 = vmatpush1.msra.mxu0 0.0
    %797 = vmatprep.subr.mxu0 0.0
    %798 = vmatpush1.msra.mxu0 0.0
    %799 = vmatprep.subr.mxu0 0.0
    %800 = vmatpush1.msra.mxu0 0.0
    %801 = vmatprep.subr.mxu0 0.0
    %802 = vmatpush1.msra.mxu0 0.0
    %803 = vmatprep.subr.mxu0 0.0
    %804 = vmatpush1.msra.mxu0 0.0
    %805 = vmatprep.subr.mxu0 0.0
    %806 = vmatpush1.msra.mxu0 0.0
    %807 = vmatprep.subr.mxu0 0.0
    %808 = vmatpush1.msra.mxu0 0.0
    %809 = vmatprep.subr.mxu0 0.0
    %810 = vmatpush1.msra.mxu0 0.0
    %811 = vmatprep.subr.mxu0 0.0
    %812 = vmatpush1.msra.mxu0 0.0
    %813 = vmatprep.subr.mxu0 0.0
    %814 = vmatpush1.msra.mxu0 0.0
    %815 = vmatprep.subr.mxu0 0.0
    %816 = vmatpush1.msra.mxu0 0.0
    %817 = vmatprep.subr.mxu0 0.0
    %818 = vmatpush1.msra.mxu0 0.0
    %819 = vmatprep.subr.mxu0 0.0
    %820 = vmatpush1.msra.mxu0 0.0
    %821 = vmatprep.subr.mxu0 0.0
    %822 = vmatpush1.msra.mxu0 0.0
    %823 = vmatprep.subr.mxu0 0.0
    %824 = vmatpush1.msra.mxu0 0.0
    %825 = vmatprep.mubr.f32.mxu0 0.0
    %826 = vmatmul.mubr.f32.gmra.mrb[0].mxu0 %v753
    %v827 = vpop.f32.mrb[0].mxu0
    %v828 = vadd.f32 0.0, %v827
    %v829 = vpop.f32.mrb[0].mxu0
    %830 = vmatprep.mubr.f32.mxu0 0.0
    %831 = vmatmul.mubr.f32.gmra.mrb[0].mxu0 %v756
    %v832 = vpop.f32.mrb[0].mxu0
    %v833 = vadd.f32 0.0, %v832
    %v834 = vpop.f32.mrb[0].mxu0
    %835 = vdwg.mxu0
    %v836 = vld [vmem:[#allocation10 + $0x1] sm:$0x1]
    %v839 = vrot.slane %v828, 1
    %v840 = vrot.slane %v833, 1
    %v841 = vsel %vm253, %v839, %v840
    %v844 = vrot.slane %v828, 2
    %v845 = vrot.slane %v833, 2
    %v846 = vsel %vm149, %v844, %v845
    %v849 = vrot.slane %v828, 3
    %v850 = vrot.slane %v833, 3
    %v851 = vsel %vm390, %v849, %v850
    %v854 = vrot.slane %v828, 4
    %v855 = vrot.slane %v833, 4
    %v856 = vsel %vm399, %v854, %v855
    %v859 = vld [vmem:[#allocation7] sm:$0xff]
    %v860 = vld [vmem:[#allocation7 + $0x8] sm:$0xff]
    %v861 = vld [vmem:[#allocation7 + $0x10] sm:$0xff]
    %v862 = vld [vmem:[#allocation7 + $0x18] sm:$0xff]
    %v863 = vld [vmem:[#allocation7 + $0x20] sm:$0xff]
    %v864 = vld [vmem:[#allocation7 + $0x28] sm:$0xff]
    %v865 = vld [vmem:[#allocation7 + $0x30] sm:$0xff]
    %v866 = vld [vmem:[#allocation7 + $0x38] sm:$0xff]
    %v867 = vld [vmem:[#allocation7 + $0x40] sm:$0xff]
    %v868 = vld [vmem:[#allocation7 + $0x48] sm:$0xff]
    %v869 = vld [vmem:[#allocation7 + $0x50] sm:$0xff]
    %v870 = vld [vmem:[#allocation7 + $0x58] sm:$0xff]
    %v871 = vld [vmem:[#allocation7 + $0x60] sm:$0xff]
    %v872 = vld [vmem:[#allocation7 + $0x68] sm:$0xff]
    %v873 = vld [vmem:[#allocation7 + $0x70] sm:$0xff]
    %v874 = vld [vmem:[#allocation7 + $0x78] sm:$0xff]
    %v875 = vld [vmem:[#allocation7 + $0x80] sm:$0xff]
    %v876 = vld [vmem:[#allocation7 + $0x88] sm:$0xff]
    %v877 = vld [vmem:[#allocation7 + $0x90] sm:$0xff]
    %v878 = vld [vmem:[#allocation7 + $0x98] sm:$0xff]
    %v879 = vld [vmem:[#allocation7 + $0xa0] sm:$0xff]
    %v880 = vld [vmem:[#allocation7 + $0xa8] sm:$0xff]
    %v881 = vld [vmem:[#allocation7 + $0xb0] sm:$0xff]
    %v882 = vld [vmem:[#allocation7 + $0xb8] sm:$0xff]
    %v883 = vld [vmem:[#allocation7 + $0xc0] sm:$0xff]
    %v884 = vld [vmem:[#allocation7 + $0xc8] sm:$0xff]
    %v885 = vld [vmem:[#allocation7 + $0xd0] sm:$0xff]
    %v886 = vld [vmem:[#allocation7 + $0xd8] sm:$0xff]
    %v887 = vld [vmem:[#allocation7 + $0xe0] sm:$0xff]
    %v888 = vld [vmem:[#allocation7 + $0xe8] sm:$0xff]
    %v889 = vld [vmem:[#allocation7 + $0xf0] sm:$0xff]
    %v890 = vld [vmem:[#allocation7 + $0xf8] sm:$0xff]
    %v891 = vld [vmem:[#allocation7 + $0x100] sm:$0xff]
    %v892 = vld [vmem:[#allocation7 + $0x108] sm:$0xff]
    %v893 = vld [vmem:[#allocation7 + $0x110] sm:$0xff]
    %v894 = vld [vmem:[#allocation7 + $0x118] sm:$0xff]
    %v895 = vld [vmem:[#allocation7 + $0x120] sm:$0xff]
    %v896 = vld [vmem:[#allocation7 + $0x128] sm:$0xff]
    %v897 = vld [vmem:[#allocation7 + $0x130] sm:$0xff]
    %v898 = vld [vmem:[#allocation7 + $0x138] sm:$0xff]
    %v899 = vld [vmem:[#allocation7 + $0x140] sm:$0xff]
    %v900 = vld [vmem:[#allocation7 + $0x148] sm:$0xff]
    %v901 = vld [vmem:[#allocation7 + $0x150] sm:$0xff]
    %v902 = vld [vmem:[#allocation7 + $0x158] sm:$0xff]
    %v903 = vld [vmem:[#allocation7 + $0x160] sm:$0xff]
    %v904 = vld [vmem:[#allocation7 + $0x168] sm:$0xff]
    %v905 = vld [vmem:[#allocation7 + $0x170] sm:$0xff]
    %v906 = vld [vmem:[#allocation7 + $0x178] sm:$0xff]
    %v907 = vld [vmem:[#allocation7 + $0x180] sm:$0xff]
    %v908 = vld [vmem:[#allocation7 + $0x188] sm:$0xff]
    %v909 = vld [vmem:[#allocation7 + $0x190] sm:$0xff]
    %v910 = vld [vmem:[#allocation7 + $0x198] sm:$0xff]
    %v911 = vld [vmem:[#allocation7 + $0x1a0] sm:$0xff]
    %v912 = vld [vmem:[#allocation7 + $0x1a8] sm:$0xff]
    %v913 = vld [vmem:[#allocation7 + $0x1b0] sm:$0xff]
    %v914 = vld [vmem:[#allocation7 + $0x1b8] sm:$0xff]
    %v915 = vld [vmem:[#allocation7 + $0x1c0] sm:$0xff]
    %v916 = vld [vmem:[#allocation7 + $0x1c8] sm:$0xff]
    %v917 = vld [vmem:[#allocation7 + $0x1d0] sm:$0xff]
    %v918 = vld [vmem:[#allocation7 + $0x1d8] sm:$0xff]
    %v919 = vld [vmem:[#allocation7 + $0x1e0] sm:$0xff]
    %v920 = vld [vmem:[#allocation7 + $0x1e8] sm:$0xff]
    %v921 = vld [vmem:[#allocation7 + $0x1f0] sm:$0xff]
    %v922 = vld [vmem:[#allocation7 + $0x1f8] sm:$0xff]
    %v923 = vld [vmem:[#allocation7 + $0x200] sm:$0xff]
    %v924 = vld [vmem:[#allocation7 + $0x208] sm:$0xff]
    %v925 = vld [vmem:[#allocation7 + $0x210] sm:$0xff]
    %v926 = vld [vmem:[#allocation7 + $0x218] sm:$0xff]
    %v927 = vld [vmem:[#allocation7 + $0x220] sm:$0xff]
    %v928 = vld [vmem:[#allocation7 + $0x228] sm:$0xff]
    %v929 = vld [vmem:[#allocation7 + $0x230] sm:$0xff]
    %v930 = vld [vmem:[#allocation7 + $0x238] sm:$0xff]
    %v931 = vld [vmem:[#allocation7 + $0x240] sm:$0xff]
    %v932 = vld [vmem:[#allocation7 + $0x248] sm:$0xff]
    %v933 = vld [vmem:[#allocation7 + $0x250] sm:$0xff]
    %v934 = vld [vmem:[#allocation7 + $0x258] sm:$0xff]
    %v935 = vld [vmem:[#allocation7 + $0x260] sm:$0xff]
    %v936 = vld [vmem:[#allocation7 + $0x268] sm:$0xff]
    %v937 = vld [vmem:[#allocation7 + $0x270] sm:$0xff]
    %v938 = vld [vmem:[#allocation7 + $0x278] sm:$0xff]
    %v939 = vlaneseq
    %v940 = vshrl.u32 %v939, 7
    %v941 = vsub.s32 0, %v940
    %v942 = vrot.slane %v836, %v941
    %943 = vmatprep.subr.mxu0 0.0
    %944 = vmatpush1.msra.mxu0 %v859
    %945 = vmatprep.subr.mxu0 0.0
    %946 = vmatpush1.msra.mxu0 %v860
    %947 = vmatprep.subr.mxu0 0.0
    %948 = vmatpush1.msra.mxu0 %v861
    %949 = vmatprep.subr.mxu0 0.0
    %950 = vmatpush1.msra.mxu0 %v862
    %951 = vmatprep.subr.mxu0 0.0
    %952 = vmatpush1.msra.mxu0 %v863
    %953 = vmatprep.subr.mxu0 0.0
    %954 = vmatpush1.msra.mxu0 %v864
    %955 = vmatprep.subr.mxu0 0.0
    %956 = vmatpush1.msra.mxu0 %v865
    %957 = vmatprep.subr.mxu0 0.0
    %958 = vmatpush1.msra.mxu0 %v866
    %959 = vmatprep.subr.mxu0 0.0
    %960 = vmatpush1.msra.mxu0 %v867
    %961 = vmatprep.subr.mxu0 0.0
    %962 = vmatpush1.msra.mxu0 %v868
    %963 = vmatprep.subr.mxu0 0.0
    %964 = vmatpush1.msra.mxu0 %v869
    %965 = vmatprep.subr.mxu0 0.0
    %966 = vmatpush1.msra.mxu0 %v870
    %967 = vmatprep.subr.mxu0 0.0
    %968 = vmatpush1.msra.mxu0 %v871
    %969 = vmatprep.subr.mxu0 0.0
    %970 = vmatpush1.msra.mxu0 %v872
    %971 = vmatprep.subr.mxu0 0.0
    %972 = vmatpush1.msra.mxu0 %v873
    %973 = vmatprep.subr.mxu0 0.0
    %974 = vmatpush1.msra.mxu0 %v874
    %975 = vmatprep.subr.mxu0 0.0
    %976 = vmatpush1.msra.mxu0 %v875
    %977 = vmatprep.subr.mxu0 0.0
    %978 = vmatpush1.msra.mxu0 %v876
    %979 = vmatprep.subr.mxu0 0.0
    %980 = vmatpush1.msra.mxu0 %v877
    %981 = vmatprep.subr.mxu0 0.0
    %982 = vmatpush1.msra.mxu0 %v878
    %983 = vmatprep.subr.mxu0 0.0
    %984 = vmatpush1.msra.mxu0 %v879
    %985 = vmatprep.subr.mxu0 0.0
    %986 = vmatpush1.msra.mxu0 %v880
    %987 = vmatprep.subr.mxu0 0.0
    %988 = vmatpush1.msra.mxu0 %v881
    %989 = vmatprep.subr.mxu0 0.0
    %990 = vmatpush1.msra.mxu0 %v882
    %991 = vmatprep.subr.mxu0 0.0
    %992 = vmatpush1.msra.mxu0 %v883
    %993 = vmatprep.subr.mxu0 0.0
    %994 = vmatpush1.msra.mxu0 %v884
    %995 = vmatprep.subr.mxu0 0.0
    %996 = vmatpush1.msra.mxu0 %v885
    %997 = vmatprep.subr.mxu0 0.0
    %998 = vmatpush1.msra.mxu0 %v886
    %999 = vmatprep.subr.mxu0 0.0
    %1000 = vmatpush1.msra.mxu0 %v887
    %1001 = vmatprep.subr.mxu0 0.0
    %1002 = vmatpush1.msra.mxu0 %v888
    %1003 = vmatprep.subr.mxu0 0.0
    %1004 = vmatpush1.msra.mxu0 %v889
    %1005 = vmatprep.subr.mxu0 0.0
    %1006 = vmatpush1.msra.mxu0 %v890
    %1007 = vmatprep.mubr.f32.mxu0 %v841
    %1008 = vmatmul.mubr.f32.gmra.mrb[0].mxu0 %v828
    %v1009 = vpop.f32.mrb[0].mxu0
    %v1010 = vadd.f32 %v942, %v1009
    %v1011 = vpop.f32.mrb[0].mxu0
    %1012 = vmatprep.mubr.f32.mxu0 %v840
    %1013 = vmatmul.mubr.f32.gmra.mrb[0].mxu0 %v833
    %v1014 = vpop.f32.mrb[0].mxu0
    %v1015 = vadd.f32 %v942, %v1014
    %v1016 = vpop.f32.mrb[0].mxu0
    %1017 = vdwg.mxu0
    %1018 = vmatprep.subr.mxu0 0.0
    %1019 = vmatpush1.msra.mxu0 %v891
    %1020 = vmatprep.subr.mxu0 0.0
    %1021 = vmatpush1.msra.mxu0 %v892
    %1022 = vmatprep.subr.mxu0 0.0
    %1023 = vmatpush1.msra.mxu0 %v893
    %1024 = vmatprep.subr.mxu0 0.0
    %1025 = vmatpush1.msra.mxu0 %v894
    %1026 = vmatprep.subr.mxu0 0.0
    %1027 = vmatpush1.msra.mxu0 %v895
    %1028 = vmatprep.subr.mxu0 0.0
    %1029 = vmatpush1.msra.mxu0 %v896
    %1030 = vmatprep.subr.mxu0 0.0
    %1031 = vmatpush1.msra.mxu0 %v897
    %1032 = vmatprep.subr.mxu0 0.0
    %1033 = vmatpush1.msra.mxu0 %v898
    %1034 = vmatprep.subr.mxu0 0.0
    %1035 = vmatpush1.msra.mxu0 %v899
    %1036 = vmatprep.subr.mxu0 0.0
    %1037 = vmatpush1.msra.mxu0 %v900
    %1038 = vmatprep.subr.mxu0 0.0
    %1039 = vmatpush1.msra.mxu0 %v901
    %1040 = vmatprep.subr.mxu0 0.0
    %1041 = vmatpush1.msra.mxu0 %v902
    %1042 = vmatprep.subr.mxu0 0.0
    %1043 = vmatpush1.msra.mxu0 %v903
    %1044 = vmatprep.subr.mxu0 0.0
    %1045 = vmatpush1.msra.mxu0 %v904
    %1046 = vmatprep.subr.mxu0 0.0
    %1047 = vmatpush1.msra.mxu0 %v905
    %1048 = vmatprep.subr.mxu0 0.0
    %1049 = vmatpush1.msra.mxu0 %v906
    %1050 = vmatprep.subr.mxu0 0.0
    %1051 = vmatpush1.msra.mxu0 %v907
    %1052 = vmatprep.subr.mxu0 0.0
    %1053 = vmatpush1.msra.mxu0 %v908
    %1054 = vmatprep.subr.mxu0 0.0
    %1055 = vmatpush1.msra.mxu0 %v909
    %1056 = vmatprep.subr.mxu0 0.0
    %1057 = vmatpush1.msra.mxu0 %v910
    %1058 = vmatprep.subr.mxu0 0.0
    %1059 = vmatpush1.msra.mxu0 %v911
    %1060 = vmatprep.subr.mxu0 0.0
    %1061 = vmatpush1.msra.mxu0 %v912
    %1062 = vmatprep.subr.mxu0 0.0
    %1063 = vmatpush1.msra.mxu0 %v913
    %1064 = vmatprep.subr.mxu0 0.0
    %1065 = vmatpush1.msra.mxu0 %v914
    %1066 = vmatprep.subr.mxu0 0.0
    %1067 = vmatpush1.msra.mxu0 %v915
    %1068 = vmatprep.subr.mxu0 0.0
    %1069 = vmatpush1.msra.mxu0 %v916
    %1070 = vmatprep.subr.mxu0 0.0
    %1071 = vmatpush1.msra.mxu0 %v917
    %1072 = vmatprep.subr.mxu0 0.0
    %1073 = vmatpush1.msra.mxu0 %v918
    %1074 = vmatprep.subr.mxu0 0.0
    %1075 = vmatpush1.msra.mxu0 %v919
    %1076 = vmatprep.subr.mxu0 0.0
    %1077 = vmatpush1.msra.mxu0 %v920
    %1078 = vmatprep.subr.mxu0 0.0
    %1079 = vmatpush1.msra.mxu0 %v921
    %1080 = vmatprep.subr.mxu0 0.0
    %1081 = vmatpush1.msra.mxu0 %v922
    %1082 = vmatprep.mubr.f32.mxu0 %v851
    %1083 = vmatmul.mubr.f32.gmra.mrb[0].mxu0 %v846
    %v1084 = vpop.f32.mrb[0].mxu0
    %v1085 = vadd.f32 %v1010, %v1084
    %v1086 = vpop.f32.mrb[0].mxu0
    %1087 = vmatprep.mubr.f32.mxu0 %v850
    %1088 = vmatmul.mubr.f32.gmra.mrb[0].mxu0 %v845
    %v1089 = vpop.f32.mrb[0].mxu0
    %v1090 = vadd.f32 %v1015, %v1089
    %v1091 = vpop.f32.mrb[0].mxu0
    %1092 = vdwg.mxu0
    %1093 = vmatprep.subr.mxu0 0.0
    %1094 = vmatpush1.msra.mxu0 %v923
    %1095 = vmatprep.subr.mxu0 0.0
    %1096 = vmatpush1.msra.mxu0 %v924
    %1097 = vmatprep.subr.mxu0 0.0
    %1098 = vmatpush1.msra.mxu0 %v925
    %1099 = vmatprep.subr.mxu0 0.0
    %1100 = vmatpush1.msra.mxu0 %v926
    %1101 = vmatprep.subr.mxu0 0.0
    %1102 = vmatpush1.msra.mxu0 %v927
    %1103 = vmatprep.subr.mxu0 0.0
    %1104 = vmatpush1.msra.mxu0 %v928
    %1105 = vmatprep.subr.mxu0 0.0
    %1106 = vmatpush1.msra.mxu0 %v929
    %1107 = vmatprep.subr.mxu0 0.0
    %1108 = vmatpush1.msra.mxu0 %v930
    %1109 = vmatprep.subr.mxu0 0.0
    %1110 = vmatpush1.msra.mxu0 %v931
    %1111 = vmatprep.subr.mxu0 0.0
    %1112 = vmatpush1.msra.mxu0 %v932
    %1113 = vmatprep.subr.mxu0 0.0
    %1114 = vmatpush1.msra.mxu0 %v933
    %1115 = vmatprep.subr.mxu0 0.0
    %1116 = vmatpush1.msra.mxu0 %v934
    %1117 = vmatprep.subr.mxu0 0.0
    %1118 = vmatpush1.msra.mxu0 %v935
    %1119 = vmatprep.subr.mxu0 0.0
    %1120 = vmatpush1.msra.mxu0 %v936
    %1121 = vmatprep.subr.mxu0 0.0
    %1122 = vmatpush1.msra.mxu0 %v937
    %1123 = vmatprep.subr.mxu0 0.0
    %1124 = vmatpush1.msra.mxu0 %v938
    %1125 = vmatprep.subr.mxu0 0.0
    %1126 = vmatpush1.msra.mxu0 0.0
    %1127 = vmatprep.subr.mxu0 0.0
    %1128 = vmatpush1.msra.mxu0 0.0
    %1129 = vmatprep.subr.mxu0 0.0
    %1130 = vmatpush1.msra.mxu0 0.0
    %1131 = vmatprep.subr.mxu0 0.0
    %1132 = vmatpush1.msra.mxu0 0.0
    %1133 = vmatprep.subr.mxu0 0.0
    %1134 = vmatpush1.msra.mxu0 0.0
    %1135 = vmatprep.subr.mxu0 0.0
    %1136 = vmatpush1.msra.mxu0 0.0
    %1137 = vmatprep.subr.mxu0 0.0
    %1138 = vmatpush1.msra.mxu0 0.0
    %1139 = vmatprep.subr.mxu0 0.0
    %1140 = vmatpush1.msra.mxu0 0.0
    %1141 = vmatprep.subr.mxu0 0.0
    %1142 = vmatpush1.msra.mxu0 0.0
    %1143 = vmatprep.subr.mxu0 0.0
    %1144 = vmatpush1.msra.mxu0 0.0
    %1145 = vmatprep.subr.mxu0 0.0
    %1146 = vmatpush1.msra.mxu0 0.0
    %1147 = vmatprep.subr.mxu0 0.0
    %1148 = vmatpush1.msra.mxu0 0.0
    %1149 = vmatprep.subr.mxu0 0.0
    %1150 = vmatpush1.msra.mxu0 0.0
    %1151 = vmatprep.subr.mxu0 0.0
    %1152 = vmatpush1.msra.mxu0 0.0
    %1153 = vmatprep.subr.mxu0 0.0
    %1154 = vmatpush1.msra.mxu0 0.0
    %1155 = vmatprep.subr.mxu0 0.0
    %1156 = vmatpush1.msra.mxu0 0.0
    %1157 = vmatprep.mubr.f32.mxu0 0.0
    %1158 = vmatmul.mubr.f32.gmra.mrb[0].mxu0 %v856
    %v1159 = vpop.f32.mrb[0].mxu0
    %v1160 = vadd.f32 %v1085, %v1159
    %v1161 = vpop.f32.mrb[0].mxu0
    %1162 = vmatprep.mubr.f32.mxu0 0.0
    %1163 = vmatmul.mubr.f32.gmra.mrb[0].mxu0 %v855
    %v1164 = vpop.f32.mrb[0].mxu0
    %v1165 = vadd.f32 %v1090, %v1164
    %v1166 = vpop.f32.mrb[0].mxu0
    %1167 = vdwg.mxu0
    %v1168 = vmax.f32 %v1160, 0.0
    %v1169 = vmax.f32 %v1165, 0.0
    %v1172 = vrot.slane %v1168, 1
    %v1173 = vrot.slane %v1169, 1
    %v1174 = vsel %vm253, %v1172, %v1173
    %v1177 = vmax.f32 %v1168, %v1174
    %v1178 = vmax.f32 %v1169, %v1173
    %v1179 = vld [vmem:[%s9] sm:$0xf]
    %vm1180 = vcmask 89088
    %v1182 = vsel %vm1180, %v1179, 0
    %v1185 = vsel %vm286, %v1178, 0
    %1187 = vmatprep.subr.mxu0 0.0
    %1188 = vmatpush1.msra.mxu0 %v1177
    %1189 = vmatprep.subr.mxu0 0.0
    %1190 = vmatpush1.msra.mxu0 %v1185
    %1191 = vmatprep.subr.mxu0 0.0
    %1192 = vmatpush1.msra.mxu0 0.0
    %1193 = vmatprep.subr.mxu0 0.0
    %1194 = vmatpush1.msra.mxu0 0.0
    %1195 = vmatprep.subr.mxu0 0.0
    %1196 = vmatpush1.msra.mxu0 0.0
    %1197 = vmatprep.subr.mxu0 0.0
    %1198 = vmatpush1.msra.mxu0 0.0
    %1199 = vmatprep.subr.mxu0 0.0
    %1200 = vmatpush1.msra.mxu0 0.0
    %1201 = vmatprep.subr.mxu0 0.0
    %1202 = vmatpush1.msra.mxu0 0.0
    %1203 = vmatprep.subr.mxu0 0.0
    %1204 = vmatpush1.msra.mxu0 0.0
    %1205 = vmatprep.subr.mxu0 0.0
    %1206 = vmatpush1.msra.mxu0 0.0
    %1207 = vmatprep.subr.mxu0 0.0
    %1208 = vmatpush1.msra.mxu0 0.0
    %1209 = vmatprep.subr.mxu0 0.0
    %1210 = vmatpush1.msra.mxu0 0.0
    %1211 = vmatprep.subr.mxu0 0.0
    %1212 = vmatpush1.msra.mxu0 0.0
    %1213 = vmatprep.subr.mxu0 0.0
    %1214 = vmatpush1.msra.mxu0 0.0
    %1215 = vmatprep.subr.mxu0 0.0
    %1216 = vmatpush1.msra.mxu0 0.0
    %1217 = vmatprep.subr.mxu0 0.0
    %1218 = vmatpush1.msra.mxu0 0.0
    %1219 = vmatprep.subr.mxu0 0.0
    %1220 = vmatpush1.msra.mxu0 0.0
    %1221 = vmatprep.subr.mxu0 0.0
    %1222 = vmatpush1.msra.mxu0 0.0
    %1223 = vmatprep.subr.mxu0 0.0
    %1224 = vmatpush1.msra.mxu0 0.0
    %1225 = vmatprep.subr.mxu0 0.0
    %1226 = vmatpush1.msra.mxu0 0.0
    %1227 = vmatprep.subr.mxu0 0.0
    %1228 = vmatpush1.msra.mxu0 0.0
    %1229 = vmatprep.subr.mxu0 0.0
    %1230 = vmatpush1.msra.mxu0 0.0
    %1231 = vmatprep.subr.mxu0 0.0
    %1232 = vmatpush1.msra.mxu0 0.0
    %1233 = vmatprep.subr.mxu0 0.0
    %1234 = vmatpush1.msra.mxu0 0.0
    %1235 = vmatprep.subr.mxu0 0.0
    %1236 = vmatpush1.msra.mxu0 0.0
    %1237 = vmatprep.subr.mxu0 0.0
    %1238 = vmatpush1.msra.mxu0 0.0
    %1239 = vmatprep.subr.mxu0 0.0
    %1240 = vmatpush1.msra.mxu0 0.0
    %1241 = vmatprep.subr.mxu0 0.0
    %1242 = vmatpush1.msra.mxu0 0.0
    %1243 = vmatprep.subr.mxu0 0.0
    %1244 = vmatpush1.msra.mxu0 0.0
    %1245 = vmatprep.subr.mxu0 0.0
    %1246 = vmatpush1.msra.mxu0 0.0
    %1247 = vmatprep.subr.mxu0 0.0
    %1248 = vmatpush1.msra.mxu0 0.0
    %1249 = vmatprep.subr.mxu0 0.0
    %1250 = vmatpush1.msra.mxu0 0.0
    %1251 = vmatprep.mubr.f32.mxu0 0.0
    %1252 = vmatmul.mubr.f32.gmra.mrb[0].mxu0 %v1182
    %v1253 = vpop.f32.mrb[0].mxu0
    %v1254 = vadd.f32 0.0, %v1253
    %v1255 = vpop.f32.mrb[0].mxu0
    %1256 = vdwg.mxu0
    %v1257 = vld [vmem:[#allocation8] sm:$0xff]
    %v1258 = vld [vmem:[#allocation8 + $0x8] sm:$0xff]
    %v1259 = vld [vmem:[#allocation8 + $0x10] sm:$0xff]
    %v1260 = vld [vmem:[#allocation8 + $0x18] sm:$0xff]
    %v1261 = vld [vmem:[#allocation8 + $0x20] sm:$0xff]
    %v1262 = vld [vmem:[#allocation8 + $0x28] sm:$0xff]
    %v1263 = vld [vmem:[#allocation8 + $0x30] sm:$0xff]
    %v1264 = vld [vmem:[#allocation8 + $0x38] sm:$0xff]
    %v1265 = vld [vmem:[#allocation8 + $0x40] sm:$0xff]
    %v1266 = vld [vmem:[#allocation8 + $0x48] sm:$0xff]
    %v1267 = vld [vmem:[#allocation8 + $0x50] sm:$0xff]
    %v1268 = vld [vmem:[#allocation8 + $0x58] sm:$0xff]
    %v1269 = vld [vmem:[#allocation8 + $0x60] sm:$0xff]
    %v1270 = vld [vmem:[#allocation8 + $0x68] sm:$0xff]
    %v1271 = vld [vmem:[#allocation8 + $0x70] sm:$0xff]
    %v1272 = vld [vmem:[#allocation8 + $0x78] sm:$0xff]
    %1273 = vmatprep.subr.mxu0 0.0
    %1274 = vmatpush1.msra.mxu0 %v1257
    %1275 = vmatprep.subr.mxu0 0.0
    %1276 = vmatpush1.msra.mxu0 %v1258
    %1277 = vmatprep.subr.mxu0 0.0
    %1278 = vmatpush1.msra.mxu0 %v1259
    %1279 = vmatprep.subr.mxu0 0.0
    %1280 = vmatpush1.msra.mxu0 %v1260
    %1281 = vmatprep.subr.mxu0 0.0
    %1282 = vmatpush1.msra.mxu0 %v1261
    %1283 = vmatprep.subr.mxu0 0.0
    %1284 = vmatpush1.msra.mxu0 %v1262
    %1285 = vmatprep.subr.mxu0 0.0
    %1286 = vmatpush1.msra.mxu0 %v1263
    %1287 = vmatprep.subr.mxu0 0.0
    %1288 = vmatpush1.msra.mxu0 %v1264
    %1289 = vmatprep.subr.mxu0 0.0
    %1290 = vmatpush1.msra.mxu0 %v1265
    %1291 = vmatprep.subr.mxu0 0.0
    %1292 = vmatpush1.msra.mxu0 %v1266
    %1293 = vmatprep.subr.mxu0 0.0
    %1294 = vmatpush1.msra.mxu0 %v1267
    %1295 = vmatprep.subr.mxu0 0.0
    %1296 = vmatpush1.msra.mxu0 %v1268
    %1297 = vmatprep.subr.mxu0 0.0
    %1298 = vmatpush1.msra.mxu0 %v1269
    %1299 = vmatprep.subr.mxu0 0.0
    %1300 = vmatpush1.msra.mxu0 %v1270
    %1301 = vmatprep.subr.mxu0 0.0
    %1302 = vmatpush1.msra.mxu0 %v1271
    %1303 = vmatprep.subr.mxu0 0.0
    %1304 = vmatpush1.msra.mxu0 %v1272
    %1305 = vmatprep.subr.mxu0 0.0
    %1306 = vmatpush1.msra.mxu0 0.0
    %1307 = vmatprep.subr.mxu0 0.0
    %1308 = vmatpush1.msra.mxu0 0.0
    %1309 = vmatprep.subr.mxu0 0.0
    %1310 = vmatpush1.msra.mxu0 0.0
    %1311 = vmatprep.subr.mxu0 0.0
    %1312 = vmatpush1.msra.mxu0 0.0
    %1313 = vmatprep.subr.mxu0 0.0
    %1314 = vmatpush1.msra.mxu0 0.0
    %1315 = vmatprep.subr.mxu0 0.0
    %1316 = vmatpush1.msra.mxu0 0.0
    %1317 = vmatprep.subr.mxu0 0.0
    %1318 = vmatpush1.msra.mxu0 0.0
    %1319 = vmatprep.subr.mxu0 0.0
    %1320 = vmatpush1.msra.mxu0 0.0
    %1321 = vmatprep.subr.mxu0 0.0
    %1322 = vmatpush1.msra.mxu0 0.0
    %1323 = vmatprep.subr.mxu0 0.0
    %1324 = vmatpush1.msra.mxu0 0.0
    %1325 = vmatprep.subr.mxu0 0.0
    %1326 = vmatpush1.msra.mxu0 0.0
    %1327 = vmatprep.subr.mxu0 0.0
    %1328 = vmatpush1.msra.mxu0 0.0
    %1329 = vmatprep.subr.mxu0 0.0
    %1330 = vmatpush1.msra.mxu0 0.0
    %1331 = vmatprep.subr.mxu0 0.0
    %1332 = vmatpush1.msra.mxu0 0.0
    %1333 = vmatprep.subr.mxu0 0.0
    %1334 = vmatpush1.msra.mxu0 0.0
    %1335 = vmatprep.subr.mxu0 0.0
    %1336 = vmatpush1.msra.mxu0 0.0
    %1337 = vmatprep.mubr.f32.mxu0 0.0
    %1338 = vmatmul.mubr.f32.gmra.mrb[0].mxu0 %v1254
    %v1339 = vpop.f32.mrb[0].mxu0
    %v1340 = vadd.f32 0.0, %v1339
    %v1341 = vpop.f32.mrb[0].mxu0
    %1342 = vdwg.mxu0
    %v1344 = vrot.slane %v1340, 2
    %1345 = vrot.lane.b32.xlu0 %v1344, 64
    %v1346 = vpop.permute.xlu0 %1345
    %v1348 = vadd.f32 %v1340, %v1346
    %v1349 = vld [vmem:[#allocation10 + $0x2] sm:$0x1]
    %v1350 = vlaneseq
    %v1351 = vshrl.u32 %v1350, 7
    %v1352 = vsub.s32 0, %v1351
    %v1353 = vrot.slane %v1349, %v1352
    %v1354 = vadd.f32 %v1348, %v1353
    %v1355 = vmax.f32 %v1354, 0.0
    %v1356 = vld [vmem:[%s5] sm:$0xff]
    %v1357 = vld [vmem:[%s5 + $0x8] sm:$0xff]
    %v1358 = vld [vmem:[%s5 + $0x10] sm:$0xff]
    %v1359 = vld [vmem:[%s5 + $0x18] sm:$0xff]
    %v1360 = vld [vmem:[%s5 + $0x20] sm:$0xff]
    %v1361 = vld [vmem:[%s5 + $0x28] sm:$0xff]
    %v1362 = vld [vmem:[%s5 + $0x30] sm:$0xff]
    %v1363 = vld [vmem:[%s5 + $0x38] sm:$0xff]
    %v1364 = vld [vmem:[#allocation10 + $0x3] sm:$0x1]
    %v1365 = vlaneseq
    %v1366 = vshrl.u32 %v1365, 7
    %v1367 = vsub.s32 0, %v1366
    %v1368 = vrot.slane %v1364, %v1367
    %vm1369 = vcmask 523264
    %v1371 = vsel %vm1369, %v1355, 0
    %1373 = vmatprep.subr.mxu0 0.0
    %1374 = vmatpush1.msra.mxu0 %v1356
    %1375 = vmatprep.subr.mxu0 0.0
    %1376 = vmatpush1.msra.mxu0 %v1357
    %1377 = vmatprep.subr.mxu0 0.0
    %1378 = vmatpush1.msra.mxu0 %v1358
    %1379 = vmatprep.subr.mxu0 0.0
    %1380 = vmatpush1.msra.mxu0 %v1359
    %1381 = vmatprep.subr.mxu0 0.0
    %1382 = vmatpush1.msra.mxu0 %v1360
    %1383 = vmatprep.subr.mxu0 0.0
    %1384 = vmatpush1.msra.mxu0 %v1361
    %1385 = vmatprep.subr.mxu0 0.0
    %1386 = vmatpush1.msra.mxu0 %v1362
    %1387 = vmatprep.subr.mxu0 0.0
    %1388 = vmatpush1.msra.mxu0 %v1363
    %1389 = vmatprep.subr.mxu0 0.0
    %1390 = vmatpush1.msra.mxu0 0.0
    %1391 = vmatprep.subr.mxu0 0.0
    %1392 = vmatpush1.msra.mxu0 0.0
    %1393 = vmatprep.subr.mxu0 0.0
    %1394 = vmatpush1.msra.mxu0 0.0
    %1395 = vmatprep.subr.mxu0 0.0
    %1396 = vmatpush1.msra.mxu0 0.0
    %1397 = vmatprep.subr.mxu0 0.0
    %1398 = vmatpush1.msra.mxu0 0.0
    %1399 = vmatprep.subr.mxu0 0.0
    %1400 = vmatpush1.msra.mxu0 0.0
    %1401 = vmatprep.subr.mxu0 0.0
    %1402 = vmatpush1.msra.mxu0 0.0
    %1403 = vmatprep.subr.mxu0 0.0
    %1404 = vmatpush1.msra.mxu0 0.0
    %1405 = vmatprep.subr.mxu0 0.0
    %1406 = vmatpush1.msra.mxu0 0.0
    %1407 = vmatprep.subr.mxu0 0.0
    %1408 = vmatpush1.msra.mxu0 0.0
    %1409 = vmatprep.subr.mxu0 0.0
    %1410 = vmatpush1.msra.mxu0 0.0
    %1411 = vmatprep.subr.mxu0 0.0
    %1412 = vmatpush1.msra.mxu0 0.0
    %1413 = vmatprep.subr.mxu0 0.0
    %1414 = vmatpush1.msra.mxu0 0.0
    %1415 = vmatprep.subr.mxu0 0.0
    %1416 = vmatpush1.msra.mxu0 0.0
    %1417 = vmatprep.subr.mxu0 0.0
    %1418 = vmatpush1.msra.mxu0 0.0
    %1419 = vmatprep.subr.mxu0 0.0
    %1420 = vmatpush1.msra.mxu0 0.0
    %1421 = vmatprep.subr.mxu0 0.0
    %1422 = vmatpush1.msra.mxu0 0.0
    %1423 = vmatprep.subr.mxu0 0.0
    %1424 = vmatpush1.msra.mxu0 0.0
    %1425 = vmatprep.subr.mxu0 0.0
    %1426 = vmatpush1.msra.mxu0 0.0
    %1427 = vmatprep.subr.mxu0 0.0
    %1428 = vmatpush1.msra.mxu0 0.0
    %1429 = vmatprep.subr.mxu0 0.0
    %1430 = vmatpush1.msra.mxu0 0.0
    %1431 = vmatprep.subr.mxu0 0.0
    %1432 = vmatpush1.msra.mxu0 0.0
    %1433 = vmatprep.subr.mxu0 0.0
    %1434 = vmatpush1.msra.mxu0 0.0
    %1435 = vmatprep.subr.mxu0 0.0
    %1436 = vmatpush1.msra.mxu0 0.0
    %1437 = vmatprep.mubr.f32.mxu0 0.0
    %1438 = vmatmul.mubr.f32.gmra.mrb[0].mxu0 %v1371
    %v1439 = vpop.f32.mrb[0].mxu0
    %v1440 = vadd.f32 %v1368, %v1439
    %v1441 = vpop.f32.mrb[0].mxu0
    %1442 = vdwg.mxu0
    %1443 = vst [vmem:[#allocation14] sm:$0x3] %v1440
    // Predicated region
    $region70: #{tpu_custom_call.1} parent=1 // pred_check
      _
    $region71: #{tpu_custom_call.1} parent=1 // pred_check_branch
      %1445 = sbr.rel (0) target = $region73
    $region72: #{tpu_custom_call.1} parent=1 // pred_region
      %s1447 = ssub.s32 32, 32
      %1448 = vsyncadd [#allocation4], %s1447
      %s1450 = sshll.u32 [#allocation14], 4
      %s1451 = int_to_ptr.vmem [resolvable:$true] %s1450
      %1453 = dma.vmem_to_hbm [thread:$0]  %s1451, 32, %s10, [#allocation4]
    $region73: #{tpu_custom_call.1} parent=1 // pred_fallthru
      _
    // Predicated region
    $region74: #{tpu_custom_call.1} parent=1 // pred_check
      _
    $region75: #{tpu_custom_call.1} parent=1 // pred_check_branch
      %1455 = sbr.rel (0) target = $region77
    $region76: #{tpu_custom_call.1} parent=1 // pred_region
      %1456 = dma.done [#allocation4], 32
    $region77: #{tpu_custom_call.1} parent=1 // pred_fallthru
      _
    %1457 = vsyncpa [#allocation3], 1
    %1458 = vsyncpa [#allocation6], 1
    %1459 = vsyncpa [#allocation9], 1
    %1460 = vsyncpa [#allocation12], 1
    %1461 = vsyncpa [#allocation4], 1

</llo_original>
